<compile_context>
chip_gen: v7x
topology: tpu7x:2x2x1
jax: 0.10.0
libtpu: 0.0.40
codegen_flags: <defaults>
</compile_context>

<pallas_src>
import jax
import jax.numpy as jnp
from jax.experimental import pallas as pl
from jax.experimental.pallas import tpu as pltpu

# small, CLIP-shaped synthetic config
B, S, D, H, P, V = 2, 8, 32, 2, 16, 64   # batch, max_length, hidden, heads, projection_dim, vocab
DH = D // H                               # head dim
FF = 4 * D                                # MLP hidden
N_LAYERS = 2
EPS = 1e-5
NEG = -1e9
OUT_PAD = 128                             # lane-dense output width (>= P, multiple of 128)


def _layernorm(x, g, b):
    mu = jnp.mean(x, axis=-1, keepdims=True)
    xc = x - mu
    var = jnp.mean(xc * xc, axis=-1, keepdims=True)
    return xc * jax.lax.rsqrt(var + EPS) * g + b


# -------------------- per-(batch, layer) grid-step kernel ------------------------------

def clip_text_kernel(x_ref, mask_ref, pool_ref,
                     wqkv_ref, bqkv_ref, wo_ref,
                     wf1_ref, bf1_ref, wf2_ref, vecs_ref,
                     lnf_ref, wproj_ref, out_ref,
                     x_scr, bias_scr):
    l = pl.program_id(1)

    # ---- layer 0: load embeddings into the resident state, build additive bias once ---
    @pl.when(l == 0)
    def _init():
        x_scr[...] = x_ref[...]
        qpos = jax.lax.broadcasted_iota(jnp.int32, (S, S), 0)
        kpos = jax.lax.broadcasted_iota(jnp.int32, (S, S), 1)
        keep = (kpos <= qpos) & (mask_ref[...] > 0)          # causal & key-padding
        bias_scr[...] = jnp.where(keep, 0.0, NEG).astype(jnp.float32)

    x = x_scr[...]                                           # (S, D) f32 resident state
    bias = bias_scr[...]                                     # (S, S) f32

    vecs = vecs_ref[...]                                     # (6, D) packed vectors
    ln1_g, ln1_b, bo = vecs[0:1], vecs[1:2], vecs[2:3]
    ln2_g, ln2_b, bf2 = vecs[3:4], vecs[4:5], vecs[5:6]

    # ---- self-attention block (pre-LN), matches HF CLIPAttention ----
    h1 = _layernorm(x, ln1_g, ln1_b).astype(jnp.bfloat16)    # LN in f32, matmul operand bf16
    h1_h = jnp.broadcast_to(h1[None], (H, S, D))             # head-batched activation view

    wqkv = wqkv_ref[...]                                     # (3H, D, DH) bf16
    bqkv = bqkv_ref[...]                                     # (3H, 1, DH) f32 (scale folded into Q)

    def proj(m):                                             # head-major projection, no slicing
        w = wqkv[m * H:(m + 1) * H]
        b = bqkv[m * H:(m + 1) * H]
        return jnp.einsum('htd,hde->hte', h1_h, w,
                          preferred_element_type=jnp.float32) + b     # (H, S, DH) f32

    q = proj(0)                                              # scale already folded in
    k = proj(1)
    v = proj(2)

    s = jnp.einsum('hqe,hke->hqk', q.astype(jnp.bfloat16), k.astype(jnp.bfloat16),
                   preferred_element_type=jnp.float32) + bias[None]   # broadcast, no H-replicate
    s = s - jnp.max(s, axis=-1, keepdims=True)
    p = jnp.exp(s)
    p = p * pl.reciprocal(jnp.sum(p, axis=-1, keepdims=True), approx=True)
    ctx = jnp.einsum('hqk,hke->hqe', p.astype(jnp.bfloat16), v.astype(jnp.bfloat16),
                     preferred_element_type=jnp.float32)              # (H, S, DH)

    # head-summed output projection (wo packed as (H, DH, D)) — no lane-axis concat
    attn_h = jnp.einsum('hqe,hed->hqd', ctx.astype(jnp.bfloat16), wo_ref[...],
                        preferred_element_type=jnp.float32)           # (H, S, D)
    x = x + jnp.sum(attn_h, axis=0) + bo

    # ---- MLP block (pre-LN, quick_gelu) ----
    h2 = _layernorm(x, ln2_g, ln2_b).astype(jnp.bfloat16)
    f = jnp.dot(h2, wf1_ref[...], preferred_element_type=jnp.float32) + bf1_ref[...]
    f = f * jax.nn.sigmoid(1.702 * f)                        # quick_gelu, f32
    x = x + jnp.dot(f.astype(jnp.bfloat16), wf2_ref[...],
                    preferred_element_type=jnp.float32) + bf2

    x_scr[...] = x                                           # carry to next layer

    # ---- last layer: pool at EOS + final LayerNorm + projection (no bias) ----
    @pl.when(l == pl.num_programs(1) - 1)
    def _final():
        pooled = jnp.sum(x * pool_ref[...], axis=0, keepdims=True)    # (1, D)
        lnf = lnf_ref[...]                                            # (2, D): [gamma; beta]
        pooled = _layernorm(pooled, lnf[0:1], lnf[1:2])
        out_ref[...] = jnp.dot(pooled.astype(jnp.bfloat16), wproj_ref[...],
                               preferred_element_type=jnp.float32)    # (1, OUT_PAD) lane-dense


# -------------------- parameter packing (head-major, bf16 matmul weights) --------------

def pack_params(params):
    layers = params["layers"]
    scale = 1.0 / (DH ** 0.5)

    def head_major_w(w):      # (D, H*DH) -> (H, D, DH)
        return jnp.transpose(w.reshape(D, H, DH), (1, 0, 2))

    def head_major_b(b):      # (1, H*DH) -> (H, 1, DH)
        return jnp.transpose(b.reshape(1, H, DH), (1, 0, 2))

    def stack(fn):
        return jnp.stack([fn(lp) for lp in layers], axis=0)

    packed = {
        "tok_emb": params["tok_emb"],
        "pos_emb": params["pos_emb"],
        # (L, 3H, D, DH) bf16; 1/sqrt(DH) folded into the Q slice (weights and bias)
        "wqkv": stack(lambda lp: jnp.concatenate(
            [head_major_w(lp["wq"] * scale), head_major_w(lp["wk"]),
             head_major_w(lp["wv"])], axis=0)).astype(jnp.bfloat16),
        "bqkv": stack(lambda lp: jnp.concatenate(
            [head_major_b(lp["bq"] * scale), head_major_b(lp["bk"]),
             head_major_b(lp["bv"])], axis=0)),                        # (L, 3H, 1, DH) f32
        "wo":   stack(lambda lp: lp["wo"].reshape(H, DH, D)).astype(jnp.bfloat16),  # (L, H, DH, D)
        "wf1":  stack(lambda lp: lp["wf1"]).astype(jnp.bfloat16),
        "bf1":  stack(lambda lp: lp["bf1"]),
        "wf2":  stack(lambda lp: lp["wf2"]).astype(jnp.bfloat16),
        "vecs": stack(lambda lp: jnp.concatenate(
            [lp["ln1_g"], lp["ln1_b"], lp["bo"],
             lp["ln2_g"], lp["ln2_b"], lp["bf2"]], axis=0)),           # (L, 6, D) f32
        "lnf":  jnp.concatenate([params["lnf_g"], params["lnf_b"]], axis=0),        # (2, D)
        "wproj": jnp.pad(params["w_proj"],
                         ((0, 0), (0, OUT_PAD - P))).astype(jnp.bfloat16),          # (D, 128)
    }
    return packed


# -------------------- wrapper: embeddings (XLA glue) + layer-streaming pallas_call -----

@jax.jit
def text_encoder_forward(ids, attn_mask, packed):
    # token + position embeddings (gather is glue; all hot-path math is in-kernel)
    x = jnp.take(packed["tok_emb"], ids, axis=0) + packed["pos_emb"][None]   # (B, S, D)
    x = x.astype(jnp.float32)
    mask = attn_mask.reshape(B, 1, S).astype(jnp.int32)                      # bool-ish, not f32
    # EOS position = argmax of token id (CLIP: EOT token has the highest id)
    pool_oh = jax.nn.one_hot(jnp.argmax(ids, axis=-1), S,
                             dtype=jnp.float32).reshape(B, S, 1)

    out = pl.pallas_call(
        clip_text_kernel,
        out_shape=jax.ShapeDtypeStruct((B, 1, OUT_PAD), jnp.float32),
        grid=(B, N_LAYERS),
        in_specs=[
            pl.BlockSpec((None, S, D), lambda b, l: (b, 0, 0)),              # embeddings
            pl.BlockSpec((None, 1, S), lambda b, l: (b, 0, 0)),              # key-padding mask
            pl.BlockSpec((None, S, 1), lambda b, l: (b, 0, 0)),              # EOS one-hot
            pl.BlockSpec((None, 3 * H, D, DH), lambda b, l: (l, 0, 0, 0)),   # wqkv  (bf16)
            pl.BlockSpec((None, 3 * H, 1, DH), lambda b, l: (l, 0, 0, 0)),   # bqkv  (f32)
            pl.BlockSpec((None, H, DH, D), lambda b, l: (l, 0, 0, 0)),       # wo    (bf16)
            pl.BlockSpec((None, D, FF), lambda b, l: (l, 0, 0)),             # wf1   (bf16)
            pl.BlockSpec((None, 1, FF), lambda b, l: (l, 0, 0)),             # bf1   (f32)
            pl.BlockSpec((None, FF, D), lambda b, l: (l, 0, 0)),             # wf2   (bf16)
            pl.BlockSpec((None, 6, D), lambda b, l: (l, 0, 0)),              # LN/bias vectors
            pl.BlockSpec((2, D), lambda b, l: (0, 0)),                       # final LN
            pl.BlockSpec((D, OUT_PAD), lambda b, l: (0, 0)),                 # projection (bf16)
        ],
        out_specs=pl.BlockSpec((None, 1, OUT_PAD), lambda b, l: (b, 0, 0)),
        scratch_shapes=[pltpu.VMEM((S, D), jnp.float32),    # resident hidden state
                        pltpu.VMEM((S, S), jnp.float32)],   # additive attention bias
        compiler_params=pltpu.CompilerParams(
            dimension_semantics=("parallel", "arbitrary")),
    )(x, mask, pool_oh,
      packed["wqkv"], packed["bqkv"], packed["wo"],
      packed["wf1"], packed["bf1"], packed["wf2"], packed["vecs"],
      packed["lnf"], packed["wproj"])
    return out.reshape(B, OUT_PAD)[:, :P]                    # (B, projection_dim)


# -------------------- deterministic synthetic parameters -------------------------------

def init_params(key):
    keys = iter(jax.random.split(key, 64))

    def nrm(shape, std=0.02):
        return jax.random.normal(next(keys), shape, jnp.float32) * std

    params = {
        "tok_emb": nrm((V, D)),
        "pos_emb": nrm((S, D), 0.01),
        "lnf_g": jnp.ones((1, D), jnp.float32),
        "lnf_b": jnp.zeros((1, D), jnp.float32),
        "w_proj": nrm((D, P)),
        "layers": [],
    }
    for _ in range(N_LAYERS):
        params["layers"].append({
            "ln1_g": jnp.ones((1, D), jnp.float32), "ln1_b": jnp.zeros((1, D), jnp.float32),
            "wq": nrm((D, D)), "bq": nrm((1, D), 0.01),
            "wk": nrm((D, D)), "bk": nrm((1, D), 0.01),
            "wv": nrm((D, D)), "bv": nrm((1, D), 0.01),
            "wo": nrm((D, D)), "bo": nrm((1, D), 0.01),
            "ln2_g": jnp.ones((1, D), jnp.float32), "ln2_b": jnp.zeros((1, D), jnp.float32),
            "wf1": nrm((D, FF)), "bf1": nrm((1, FF), 0.01),
            "wf2": nrm((FF, D)), "bf2": nrm((1, D), 0.01),
        })
    return params


if __name__ == "__main__":
    key = jax.random.PRNGKey(0)
    pkey, ikey = jax.random.split(key)
    params = init_params(pkey)
    packed = pack_params(params)

    # synthetic pre-tokenized batch: lengths 6 and 8, EOS token (= highest id V-1)
    # at position len-1, padding token id 0 afterwards — mimics padding='max_length'.
    lengths = jnp.array([6, 8], dtype=jnp.int32)
    pos = jnp.arange(S)
    rand_ids = jax.random.randint(ikey, (B, S), 1, V - 1)
    ids = jnp.where(pos[None, :] < (lengths - 1)[:, None], rand_ids, 0)
    ids = jnp.where(pos[None, :] == (lengths - 1)[:, None], V - 1, ids).astype(jnp.int32)
    attn_mask = (pos[None, :] < lengths[:, None]).astype(jnp.int32)

    text_features = text_encoder_forward(ids, attn_mask, packed)   # (B, projection_dim)
    jax.block_until_ready(text_features)
    assert text_features.shape == (B, P)
    assert bool(jnp.all(jnp.isfinite(text_features)))
    print("KERNEL_OK")
</pallas_src>

<mosaic_0001>
module attributes {stable_mosaic.version = 11 : i64} {
  func.func @clip_text_kernel(%arg0: i32, %arg1: i32, %arg2: memref<1x8x32xf32, #tpu.memory_space<vmem>>, %arg3: memref<1x1x8xi32, #tpu.memory_space<vmem>>, %arg4: memref<1x8x1xf32, #tpu.memory_space<vmem>>, %arg5: memref<1x6x32x16xbf16, #tpu.memory_space<vmem>>, %arg6: memref<1x6x1x16xf32, #tpu.memory_space<vmem>>, %arg7: memref<1x2x16x32xbf16, #tpu.memory_space<vmem>>, %arg8: memref<1x32x128xbf16, #tpu.memory_space<vmem>>, %arg9: memref<1x1x128xf32, #tpu.memory_space<vmem>>, %arg10: memref<1x128x32xbf16, #tpu.memory_space<vmem>>, %arg11: memref<1x6x32xf32, #tpu.memory_space<vmem>>, %arg12: memref<2x32xf32, #tpu.memory_space<vmem>>, %arg13: memref<32x128xbf16, #tpu.memory_space<vmem>>, %arg14: memref<1x1x128xf32, #tpu.memory_space<vmem>>, %arg15: memref<8x32xf32, #tpu.memory_space<vmem>>, %arg16: memref<8x8xf32, #tpu.memory_space<vmem>>) attributes {dimension_semantics = [#tpu.dimension_semantics<parallel>, #tpu.dimension_semantics<arbitrary>], iteration_bounds = array<i64: 2, 2>, scalar_prefetch = 0 : i64, scratch_operands = 2 : i64, tpu.core_type = #tpu.core_type<tc>, window_params = [{transform_indices = @transform_0, window_bounds = array<i64: 1, 8, 32>}, {transform_indices = @transform_1, window_bounds = array<i64: 1, 1, 8>}, {transform_indices = @transform_2, window_bounds = array<i64: 1, 8, 1>}, {transform_indices = @transform_3, window_bounds = array<i64: 1, 6, 32, 16>}, {transform_indices = @transform_4, window_bounds = array<i64: 1, 6, 1, 16>}, {transform_indices = @transform_5, window_bounds = array<i64: 1, 2, 16, 32>}, {transform_indices = @transform_6, window_bounds = array<i64: 1, 32, 128>}, {transform_indices = @transform_7, window_bounds = array<i64: 1, 1, 128>}, {transform_indices = @transform_8, window_bounds = array<i64: 1, 128, 32>}, {transform_indices = @transform_9, window_bounds = array<i64: 1, 6, 32>}, {pipeline_mode = #tpu.pipeline_mode<synchronous>, transform_indices = @transform_10, window_bounds = array<i64: 2, 32>}, {pipeline_mode = #tpu.pipeline_mode<synchronous>, transform_indices = @transform_11, window_bounds = array<i64: 32, 128>}, {transform_indices = @transform_12, window_bounds = array<i64: 1, 1, 128>}]} {
    %c0_i32 = arith.constant 0 : i32
    %0 = arith.cmpi eq, %arg1, %c0_i32 : i32
    %1 = arith.extui %0 : i1 to i32
    %c0_i32_0 = arith.constant 0 : i32
    %2 = arith.cmpi ne, %1, %c0_i32_0 : i32
    scf.if %2 {
      %c0_53 = arith.constant 0 : index
      %c0_54 = arith.constant 0 : index
      %c0_55 = arith.constant 0 : index
      %130 = vector.load %arg2[%c0_53, %c0_54, %c0_55] : memref<1x8x32xf32, #tpu.memory_space<vmem>>, vector<1x8x32xf32>
      %131 = vector.shape_cast %130 : vector<1x8x32xf32> to vector<8x32xf32>
      %c0_56 = arith.constant 0 : index
      %c0_57 = arith.constant 0 : index
      %132 = vector.load %arg15[%c0_56, %c0_57] : memref<8x32xf32, #tpu.memory_space<vmem>>, vector<8x32xf32>
      tpu.vector_store %arg15[%c0_56, %c0_57], %131 {strides = array<i32>} : memref<8x32xf32, #tpu.memory_space<vmem>>, vector<8x32xf32>,
      %133 = tpu.iota {dimensions = array<i32: 0>} : vector<8x8xi32>
      %134 = tpu.iota {dimensions = array<i32: 1>} : vector<8x8xi32>
      %135 = arith.cmpi sle, %134, %133 : vector<8x8xi32>
      %c0_58 = arith.constant 0 : index
      %c0_59 = arith.constant 0 : index
      %c0_60 = arith.constant 0 : index
      %136 = vector.load %arg3[%c0_58, %c0_59, %c0_60] : memref<1x1x8xi32, #tpu.memory_space<vmem>>, vector<1x1x8xi32>
      %137 = vector.shape_cast %136 : vector<1x1x8xi32> to vector<1x8xi32>
      %c0_i32_61 = arith.constant 0 : i32
      %138 = vector.broadcast %c0_i32_61 : i32 to vector<1x8xi32>
      %139 = arith.cmpi sgt, %137, %138 : vector<1x8xi32>
      %140 = vector.broadcast %139 : vector<1x8xi1> to vector<8x8xi1>
      %141 = arith.andi %135, %140 : vector<8x8xi1>
      %cst_62 = arith.constant 0.000000e+00 : f32
      %cst_63 = arith.constant -1.000000e+09 : f32
      %142 = vector.broadcast %cst_62 : f32 to vector<8x8xf32>
      %143 = vector.broadcast %cst_63 : f32 to vector<8x8xf32>
      %144 = arith.select %141, %142, %143 : vector<8x8xi1>, vector<8x8xf32>
      %c0_64 = arith.constant 0 : index
      %c0_65 = arith.constant 0 : index
      %145 = vector.load %arg16[%c0_64, %c0_65] : memref<8x8xf32, #tpu.memory_space<vmem>>, vector<8x8xf32>
      tpu.vector_store %arg16[%c0_64, %c0_65], %144 {strides = array<i32>} : memref<8x8xf32, #tpu.memory_space<vmem>>, vector<8x8xf32>,
    } else {
    }
    %c0 = arith.constant 0 : index
    %c0_1 = arith.constant 0 : index
    %3 = vector.load %arg15[%c0, %c0_1] : memref<8x32xf32, #tpu.memory_space<vmem>>, vector<8x32xf32>
    %c0_2 = arith.constant 0 : index
    %c0_3 = arith.constant 0 : index
    %4 = vector.load %arg16[%c0_2, %c0_3] : memref<8x8xf32, #tpu.memory_space<vmem>>, vector<8x8xf32>
    %c0_4 = arith.constant 0 : index
    %c0_5 = arith.constant 0 : index
    %c0_6 = arith.constant 0 : index
    %5 = vector.load %arg11[%c0_4, %c0_5, %c0_6] : memref<1x6x32xf32, #tpu.memory_space<vmem>>, vector<1x6x32xf32>
    %6 = vector.shape_cast %5 : vector<1x6x32xf32> to vector<6x32xf32>
    %7 = vector.extract_strided_slice %6 {offsets = [0, 0], sizes = [1, 32], strides = [1, 1]} : vector<6x32xf32> to vector<1x32xf32>
    %8 = vector.extract_strided_slice %6 {offsets = [1, 0], sizes = [1, 32], strides = [1, 1]} : vector<6x32xf32> to vector<1x32xf32>
    %9 = vector.extract_strided_slice %6 {offsets = [2, 0], sizes = [1, 32], strides = [1, 1]} : vector<6x32xf32> to vector<1x32xf32>
    %10 = vector.extract_strided_slice %6 {offsets = [3, 0], sizes = [1, 32], strides = [1, 1]} : vector<6x32xf32> to vector<1x32xf32>
    %11 = vector.extract_strided_slice %6 {offsets = [4, 0], sizes = [1, 32], strides = [1, 1]} : vector<6x32xf32> to vector<1x32xf32>
    %12 = vector.extract_strided_slice %6 {offsets = [5, 0], sizes = [1, 32], strides = [1, 1]} : vector<6x32xf32> to vector<1x32xf32>
    %cst = arith.constant dense<0.000000e+00> : vector<8xf32>
    %13 = vector.multi_reduction <add>, %3, %cst [1] : vector<8x32xf32> to vector<8xf32>
    %14 = vector.shape_cast %13 : vector<8xf32> to vector<8x1xf32>
    %cst_7 = arith.constant 3.200000e+01 : f32
    %15 = vector.broadcast %cst_7 : f32 to vector<8x1xf32>
    %16 = arith.divf %14, %15 : vector<8x1xf32>
    %17 = vector.broadcast %16 : vector<8x1xf32> to vector<8x32xf32>
    %18 = arith.subf %3, %17 : vector<8x32xf32>
    %19 = arith.mulf %18, %18 : vector<8x32xf32>
    %cst_8 = arith.constant dense<0.000000e+00> : vector<8xf32>
    %20 = vector.multi_reduction <add>, %19, %cst_8 [1] : vector<8x32xf32> to vector<8xf32>
    %21 = vector.shape_cast %20 : vector<8xf32> to vector<8x1xf32>
    %cst_9 = arith.constant 3.200000e+01 : f32
    %22 = vector.broadcast %cst_9 : f32 to vector<8x1xf32>
    %23 = arith.divf %21, %22 : vector<8x1xf32>
    %cst_10 = arith.constant 9.99999974E-6 : f32
    %24 = vector.broadcast %cst_10 : f32 to vector<8x1xf32>
    %25 = arith.addf %23, %24 : vector<8x1xf32>
    %26 = math.rsqrt %25 : vector<8x1xf32>
    %27 = vector.broadcast %26 : vector<8x1xf32> to vector<8x32xf32>
    %28 = arith.mulf %18, %27 : vector<8x32xf32>
    %29 = vector.broadcast %7 : vector<1x32xf32> to vector<8x32xf32>
    %30 = arith.mulf %28, %29 : vector<8x32xf32>
    %31 = vector.broadcast %8 : vector<1x32xf32> to vector<8x32xf32>
    %32 = arith.addf %30, %31 : vector<8x32xf32>
    %33 = arith.truncf %32 : vector<8x32xf32> to vector<8x32xbf16>
    %34 = vector.shape_cast %33 : vector<8x32xbf16> to vector<1x8x32xbf16>
    %35 = vector.shape_cast %34 : vector<1x8x32xbf16> to vector<1x8x32xbf16>
    %36 = vector.broadcast %35 : vector<1x8x32xbf16> to vector<2x8x32xbf16>
    %c0_11 = arith.constant 0 : index
    %c0_12 = arith.constant 0 : index
    %c0_13 = arith.constant 0 : index
    %c0_14 = arith.constant 0 : index
    %37 = vector.load %arg5[%c0_11, %c0_12, %c0_13, %c0_14] : memref<1x6x32x16xbf16, #tpu.memory_space<vmem>>, vector<1x6x32x16xbf16>
    %38 = vector.shape_cast %37 : vector<1x6x32x16xbf16> to vector<6x32x16xbf16>
    %c0_15 = arith.constant 0 : index
    %c0_16 = arith.constant 0 : index
    %c0_17 = arith.constant 0 : index
    %c0_18 = arith.constant 0 : index
    %39 = vector.load %arg6[%c0_15, %c0_16, %c0_17, %c0_18] : memref<1x6x1x16xf32, #tpu.memory_space<vmem>>, vector<1x6x1x16xf32>
    %40 = vector.shape_cast %39 : vector<1x6x1x16xf32> to vector<6x1x16xf32>
    %41 = vector.extract_strided_slice %38 {offsets = [0, 0, 0], sizes = [2, 32, 16], strides = [1, 1, 1]} : vector<6x32x16xbf16> to vector<2x32x16xbf16>
    %42 = vector.extract_strided_slice %40 {offsets = [0, 0, 0], sizes = [2, 1, 16], strides = [1, 1, 1]} : vector<6x1x16xf32> to vector<2x1x16xf32>
    "tpu.trace_start"() <{level = 10 : i32, message = "htd,hde->hte"}> : () -> ()
    %cst_19 = arith.constant dense<0.000000e+00> : vector<2x8x16xf32>
    %43 = tpu.matmul %36, %41, %cst_19 {dimension_numbers = #tpu.dot_dimension_numbers<[2], [1], [1], [2], [0, 0, 0, 1, 1, 2], [0], [0]>} : vector<2x8x32xbf16>, vector<2x32x16xbf16>, vector<2x8x16xf32> -> vector<2x8x16xf32>
    "tpu.trace_stop"() : () -> ()
    %44 = vector.broadcast %42 : vector<2x1x16xf32> to vector<2x8x16xf32>
    %45 = arith.addf %43, %44 : vector<2x8x16xf32>
    %46 = vector.extract_strided_slice %38 {offsets = [2, 0, 0], sizes = [2, 32, 16], strides = [1, 1, 1]} : vector<6x32x16xbf16> to vector<2x32x16xbf16>
    %47 = vector.extract_strided_slice %40 {offsets = [2, 0, 0], sizes = [2, 1, 16], strides = [1, 1, 1]} : vector<6x1x16xf32> to vector<2x1x16xf32>
    "tpu.trace_start"() <{level = 10 : i32, message = "htd,hde->hte"}> : () -> ()
    %cst_20 = arith.constant dense<0.000000e+00> : vector<2x8x16xf32>
    %48 = tpu.matmul %36, %46, %cst_20 {dimension_numbers = #tpu.dot_dimension_numbers<[2], [1], [1], [2], [0, 0, 0, 1, 1, 2], [0], [0]>} : vector<2x8x32xbf16>, vector<2x32x16xbf16>, vector<2x8x16xf32> -> vector<2x8x16xf32>
    "tpu.trace_stop"() : () -> ()
    %49 = vector.broadcast %47 : vector<2x1x16xf32> to vector<2x8x16xf32>
    %50 = arith.addf %48, %49 : vector<2x8x16xf32>
    %51 = vector.extract_strided_slice %38 {offsets = [4, 0, 0], sizes = [2, 32, 16], strides = [1, 1, 1]} : vector<6x32x16xbf16> to vector<2x32x16xbf16>
    %52 = vector.extract_strided_slice %40 {offsets = [4, 0, 0], sizes = [2, 1, 16], strides = [1, 1, 1]} : vector<6x1x16xf32> to vector<2x1x16xf32>
    "tpu.trace_start"() <{level = 10 : i32, message = "htd,hde->hte"}> : () -> ()
    %cst_21 = arith.constant dense<0.000000e+00> : vector<2x8x16xf32>
    %53 = tpu.matmul %36, %51, %cst_21 {dimension_numbers = #tpu.dot_dimension_numbers<[2], [1], [1], [2], [0, 0, 0, 1, 1, 2], [0], [0]>} : vector<2x8x32xbf16>, vector<2x32x16xbf16>, vector<2x8x16xf32> -> vector<2x8x16xf32>
    "tpu.trace_stop"() : () -> ()
    %54 = vector.broadcast %52 : vector<2x1x16xf32> to vector<2x8x16xf32>
    %55 = arith.addf %53, %54 : vector<2x8x16xf32>
    %56 = arith.truncf %45 : vector<2x8x16xf32> to vector<2x8x16xbf16>
    %57 = arith.truncf %50 : vector<2x8x16xf32> to vector<2x8x16xbf16>
    "tpu.trace_start"() <{level = 10 : i32, message = "hqe,hke->hqk"}> : () -> ()
    %cst_22 = arith.constant dense<0.000000e+00> : vector<2x8x8xf32>
    %58 = tpu.matmul %56, %57, %cst_22 {dimension_numbers = #tpu.dot_dimension_numbers<[2], [2], [1], [1], [0, 0, 0, 1, 1, 1], [0], [0]>} : vector<2x8x16xbf16>, vector<2x8x16xbf16>, vector<2x8x8xf32> -> vector<2x8x8xf32>
    "tpu.trace_stop"() : () -> ()
    %59 = vector.shape_cast %4 : vector<8x8xf32> to vector<1x8x8xf32>
    %60 = vector.broadcast %59 : vector<1x8x8xf32> to vector<2x8x8xf32>
    %61 = arith.addf %58, %60 : vector<2x8x8xf32>
    %cst_23 = arith.constant dense<0xFF800000> : vector<2x8xf32>
    %62 = vector.multi_reduction <maximumf>, %61, %cst_23 [2] : vector<2x8x8xf32> to vector<2x8xf32>
    %63 = vector.shape_cast %62 : vector<2x8xf32> to vector<2x8x1xf32>
    %64 = vector.broadcast %63 : vector<2x8x1xf32> to vector<2x8x8xf32>
    %65 = arith.subf %61, %64 : vector<2x8x8xf32>
    %66 = math.exp %65 : vector<2x8x8xf32>
    %cst_24 = arith.constant dense<0.000000e+00> : vector<2x8xf32>
    %67 = vector.multi_reduction <add>, %66, %cst_24 [2] : vector<2x8x8xf32> to vector<2x8xf32>
    %68 = vector.shape_cast %67 : vector<2x8xf32> to vector<2x8x1xf32>
    %69 = tpu.reciprocal %68 {approx = true} : vector<2x8x1xf32> -> vector<2x8x1xf32>
    %70 = vector.broadcast %69 : vector<2x8x1xf32> to vector<2x8x8xf32>
    %71 = arith.mulf %66, %70 : vector<2x8x8xf32>
    %72 = arith.truncf %71 : vector<2x8x8xf32> to vector<2x8x8xbf16>
    %73 = arith.truncf %55 : vector<2x8x16xf32> to vector<2x8x16xbf16>
    "tpu.trace_start"() <{level = 10 : i32, message = "hqk,hke->hqe"}> : () -> ()
    %cst_25 = arith.constant dense<0.000000e+00> : vector<2x8x16xf32>
    %74 = tpu.matmul %72, %73, %cst_25 {dimension_numbers = #tpu.dot_dimension_numbers<[2], [1], [1], [2], [0, 0, 0, 1, 1, 2], [0], [0]>} : vector<2x8x8xbf16>, vector<2x8x16xbf16>, vector<2x8x16xf32> -> vector<2x8x16xf32>
    "tpu.trace_stop"() : () -> ()
    %75 = arith.truncf %74 : vector<2x8x16xf32> to vector<2x8x16xbf16>
    %c0_26 = arith.constant 0 : index
    %c0_27 = arith.constant 0 : index
    %c0_28 = arith.constant 0 : index
    %c0_29 = arith.constant 0 : index
    %76 = vector.load %arg7[%c0_26, %c0_27, %c0_28, %c0_29] : memref<1x2x16x32xbf16, #tpu.memory_space<vmem>>, vector<1x2x16x32xbf16>
    %77 = vector.shape_cast %76 : vector<1x2x16x32xbf16> to vector<2x16x32xbf16>
    "tpu.trace_start"() <{level = 10 : i32, message = "hqe,hed->hqd"}> : () -> ()
    %cst_30 = arith.constant dense<0.000000e+00> : vector<2x8x32xf32>
    %78 = tpu.matmul %75, %77, %cst_30 {dimension_numbers = #tpu.dot_dimension_numbers<[2], [1], [1], [2], [0, 0, 0, 1, 1, 2], [0], [0]>} : vector<2x8x16xbf16>, vector<2x16x32xbf16>, vector<2x8x32xf32> -> vector<2x8x32xf32>
    "tpu.trace_stop"() : () -> ()
    %cst_31 = arith.constant dense<0.000000e+00> : vector<8x32xf32>
    %79 = vector.multi_reduction <add>, %78, %cst_31 [0] : vector<2x8x32xf32> to vector<8x32xf32>
    %80 = arith.addf %3, %79 : vector<8x32xf32>
    %81 = vector.broadcast %9 : vector<1x32xf32> to vector<8x32xf32>
    %82 = arith.addf %80, %81 : vector<8x32xf32>
    %cst_32 = arith.constant dense<0.000000e+00> : vector<8xf32>
    %83 = vector.multi_reduction <add>, %82, %cst_32 [1] : vector<8x32xf32> to vector<8xf32>
    %84 = vector.shape_cast %83 : vector<8xf32> to vector<8x1xf32>
    %cst_33 = arith.constant 3.200000e+01 : f32
    %85 = vector.broadcast %cst_33 : f32 to vector<8x1xf32>
    %86 = arith.divf %84, %85 : vector<8x1xf32>
    %87 = vector.broadcast %86 : vector<8x1xf32> to vector<8x32xf32>
    %88 = arith.subf %82, %87 : vector<8x32xf32>
    %89 = arith.mulf %88, %88 : vector<8x32xf32>
    %cst_34 = arith.constant dense<0.000000e+00> : vector<8xf32>
    %90 = vector.multi_reduction <add>, %89, %cst_34 [1] : vector<8x32xf32> to vector<8xf32>
    %91 = vector.shape_cast %90 : vector<8xf32> to vector<8x1xf32>
    %cst_35 = arith.constant 3.200000e+01 : f32
    %92 = vector.broadcast %cst_35 : f32 to vector<8x1xf32>
    %93 = arith.divf %91, %92 : vector<8x1xf32>
    %cst_36 = arith.constant 9.99999974E-6 : f32
    %94 = vector.broadcast %cst_36 : f32 to vector<8x1xf32>
    %95 = arith.addf %93, %94 : vector<8x1xf32>
    %96 = math.rsqrt %95 : vector<8x1xf32>
    %97 = vector.broadcast %96 : vector<8x1xf32> to vector<8x32xf32>
    %98 = arith.mulf %88, %97 : vector<8x32xf32>
    %99 = vector.broadcast %10 : vector<1x32xf32> to vector<8x32xf32>
    %100 = arith.mulf %98, %99 : vector<8x32xf32>
    %101 = vector.broadcast %11 : vector<1x32xf32> to vector<8x32xf32>
    %102 = arith.addf %100, %101 : vector<8x32xf32>
    %103 = arith.truncf %102 : vector<8x32xf32> to vector<8x32xbf16>
    %c0_37 = arith.constant 0 : index
    %c0_38 = arith.constant 0 : index
    %c0_39 = arith.constant 0 : index
    %104 = vector.load %arg8[%c0_37, %c0_38, %c0_39] : memref<1x32x128xbf16, #tpu.memory_space<vmem>>, vector<1x32x128xbf16>
    %105 = vector.shape_cast %104 : vector<1x32x128xbf16> to vector<32x128xbf16>
    %cst_40 = arith.constant dense<0.000000e+00> : vector<8x128xf32>
    %106 = tpu.matmul %103, %105, %cst_40 {dimension_numbers = #tpu.dot_dimension_numbers<[1], [0], [0], [1], [0, 0, 1, 1], [], []>} : vector<8x32xbf16>, vector<32x128xbf16>, vector<8x128xf32> -> vector<8x128xf32>
    %c0_41 = arith.constant 0 : index
    %c0_42 = arith.constant 0 : index
    %c0_43 = arith.constant 0 : index
    %107 = vector.load %arg9[%c0_41, %c0_42, %c0_43] : memref<1x1x128xf32, #tpu.memory_space<vmem>>, vector<1x1x128xf32>
    %108 = vector.shape_cast %107 : vector<1x1x128xf32> to vector<1x128xf32>
    %109 = vector.broadcast %108 : vector<1x128xf32> to vector<8x128xf32>
    %110 = arith.addf %106, %109 : vector<8x128xf32>
    %cst_44 = arith.constant 1.702000e+00 : f32
    %111 = vector.broadcast %cst_44 : f32 to vector<8x128xf32>
    %112 = arith.mulf %111, %110 : vector<8x128xf32>
    %113 = arith.negf %112 : vector<8x128xf32>
    %114 = math.exp %113 : vector<8x128xf32>
    %cst_45 = arith.constant 1.000000e+00 : f32
    %115 = vector.broadcast %cst_45 : f32 to vector<8x128xf32>
    %116 = arith.addf %115, %114 : vector<8x128xf32>
    %117 = arith.divf %115, %116 : vector<8x128xf32>
    %118 = arith.mulf %110, %117 : vector<8x128xf32>
    %119 = arith.truncf %118 : vector<8x128xf32> to vector<8x128xbf16>
    %c0_46 = arith.constant 0 : index
    %c0_47 = arith.constant 0 : index
    %c0_48 = arith.constant 0 : index
    %120 = vector.load %arg10[%c0_46, %c0_47, %c0_48] : memref<1x128x32xbf16, #tpu.memory_space<vmem>>, vector<1x128x32xbf16>
    %121 = vector.shape_cast %120 : vector<1x128x32xbf16> to vector<128x32xbf16>
    %cst_49 = arith.constant dense<0.000000e+00> : vector<8x32xf32>
    %122 = tpu.matmul %119, %121, %cst_49 {dimension_numbers = #tpu.dot_dimension_numbers<[1], [0], [0], [1], [0, 0, 1, 1], [], []>} : vector<8x128xbf16>, vector<128x32xbf16>, vector<8x32xf32> -> vector<8x32xf32>
    %123 = arith.addf %82, %122 : vector<8x32xf32>
    %124 = vector.broadcast %12 : vector<1x32xf32> to vector<8x32xf32>
    %125 = arith.addf %123, %124 : vector<8x32xf32>
    %c0_50 = arith.constant 0 : index
    %c0_51 = arith.constant 0 : index
    %126 = vector.load %arg15[%c0_50, %c0_51] : memref<8x32xf32, #tpu.memory_space<vmem>>, vector<8x32xf32>
    tpu.vector_store %arg15[%c0_50, %c0_51], %125 {strides = array<i32>} : memref<8x32xf32, #tpu.memory_space<vmem>>, vector<8x32xf32>,
    %c1_i32 = arith.constant 1 : i32
    %127 = arith.cmpi eq, %arg1, %c1_i32 : i32
    %128 = arith.extui %127 : i1 to i32
    %c0_i32_52 = arith.constant 0 : i32
    %129 = arith.cmpi ne, %128, %c0_i32_52 : i32
    scf.if %129 {
      %c0_53 = arith.constant 0 : index
      %c0_54 = arith.constant 0 : index
      %c0_55 = arith.constant 0 : index
      %130 = vector.load %arg4[%c0_53, %c0_54, %c0_55] : memref<1x8x1xf32, #tpu.memory_space<vmem>>, vector<1x8x1xf32>
      %131 = vector.shape_cast %130 : vector<1x8x1xf32> to vector<8x1xf32>
      %132 = vector.broadcast %131 : vector<8x1xf32> to vector<8x32xf32>
      %133 = arith.mulf %125, %132 : vector<8x32xf32>
      %cst_56 = arith.constant dense<0.000000e+00> : vector<32xf32>
      %134 = vector.multi_reduction <add>, %133, %cst_56 [0] : vector<8x32xf32> to vector<32xf32>
      %135 = vector.shape_cast %134 : vector<32xf32> to vector<1x32xf32>
      %c0_57 = arith.constant 0 : index
      %c0_58 = arith.constant 0 : index
      %136 = vector.load %arg12[%c0_57, %c0_58] : memref<2x32xf32, #tpu.memory_space<vmem>>, vector<2x32xf32>
      %137 = vector.extract_strided_slice %136 {offsets = [0, 0], sizes = [1, 32], strides = [1, 1]} : vector<2x32xf32> to vector<1x32xf32>
      %138 = vector.extract_strided_slice %136 {offsets = [1, 0], sizes = [1, 32], strides = [1, 1]} : vector<2x32xf32> to vector<1x32xf32>
      %cst_59 = arith.constant dense<0.000000e+00> : vector<1xf32>
      %139 = vector.multi_reduction <add>, %135, %cst_59 [1] : vector<1x32xf32> to vector<1xf32>
      %140 = vector.shape_cast %139 : vector<1xf32> to vector<1x1xf32>
      %cst_60 = arith.constant 3.200000e+01 : f32
      %141 = vector.broadcast %cst_60 : f32 to vector<1x1xf32>
      %142 = arith.divf %140, %141 : vector<1x1xf32>
      %143 = vector.broadcast %142 : vector<1x1xf32> to vector<1x32xf32>
      %144 = arith.subf %135, %143 : vector<1x32xf32>
      %145 = arith.mulf %144, %144 : vector<1x32xf32>
      %cst_61 = arith.constant dense<0.000000e+00> : vector<1xf32>
      %146 = vector.multi_reduction <add>, %145, %cst_61 [1] : vector<1x32xf32> to vector<1xf32>
      %147 = vector.shape_cast %146 : vector<1xf32> to vector<1x1xf32>
      %cst_62 = arith.constant 3.200000e+01 : f32
      %148 = vector.broadcast %cst_62 : f32 to vector<1x1xf32>
      %149 = arith.divf %147, %148 : vector<1x1xf32>
      %cst_63 = arith.constant 9.99999974E-6 : f32
      %150 = vector.broadcast %cst_63 : f32 to vector<1x1xf32>
      %151 = arith.addf %149, %150 : vector<1x1xf32>
      %152 = math.rsqrt %151 : vector<1x1xf32>
      %153 = vector.broadcast %152 : vector<1x1xf32> to vector<1x32xf32>
      %154 = arith.mulf %144, %153 : vector<1x32xf32>
      %155 = arith.mulf %154, %137 : vector<1x32xf32>
      %156 = arith.addf %155, %138 : vector<1x32xf32>
      %157 = arith.truncf %156 : vector<1x32xf32> to vector<1x32xbf16>
      %c0_64 = arith.constant 0 : index
      %c0_65 = arith.constant 0 : index
      %158 = vector.load %arg13[%c0_64, %c0_65] : memref<32x128xbf16, #tpu.memory_space<vmem>>, vector<32x128xbf16>
      %cst_66 = arith.constant dense<0.000000e+00> : vector<1x128xf32>
      %159 = tpu.matmul %157, %158, %cst_66 {dimension_numbers = #tpu.dot_dimension_numbers<[1], [0], [0], [1], [0, 0, 1, 1], [], []>} : vector<1x32xbf16>, vector<32x128xbf16>, vector<1x128xf32> -> vector<1x128xf32>
      %c0_67 = arith.constant 0 : index
      %c0_68 = arith.constant 0 : index
      %c0_69 = arith.constant 0 : index
      %160 = vector.load %arg14[%c0_67, %c0_68, %c0_69] : memref<1x1x128xf32, #tpu.memory_space<vmem>>, vector<1x1x128xf32>
      %161 = vector.shape_cast %160 : vector<1x1x128xf32> to vector<1x128xf32>
      %162 = vector.shape_cast %159 : vector<1x128xf32> to vector<1x1x128xf32>
      tpu.vector_store %arg14[%c0_67, %c0_68, %c0_69], %162 {strides = array<i32>} : memref<1x1x128xf32, #tpu.memory_space<vmem>>, vector<1x1x128xf32>,
    } else {
    }
    return
  }
  func.func @transform_0(%arg0: i32, %arg1: i32) -> (i32, i32, i32) {
    %c0_i32 = arith.constant 0 : i32
    %c0_i32_0 = arith.constant 0 : i32
    %c0_i32_1 = arith.constant 0 : i32
    return %arg0, %c0_i32, %c0_i32_0 : i32, i32, i32
  }
  func.func @transform_1(%arg0: i32, %arg1: i32) -> (i32, i32, i32) {
    %c0_i32 = arith.constant 0 : i32
    %c0_i32_0 = arith.constant 0 : i32
    %c0_i32_1 = arith.constant 0 : i32
    return %arg0, %c0_i32, %c0_i32_0 : i32, i32, i32
  }
  func.func @transform_2(%arg0: i32, %arg1: i32) -> (i32, i32, i32) {
    %c0_i32 = arith.constant 0 : i32
    %c0_i32_0 = arith.constant 0 : i32
    %c0_i32_1 = arith.constant 0 : i32
    return %arg0, %c0_i32, %c0_i32_0 : i32, i32, i32
  }
  func.func @transform_3(%arg0: i32, %arg1: i32) -> (i32, i32, i32, i32) {
    %c0_i32 = arith.constant 0 : i32
    %c0_i32_0 = arith.constant 0 : i32
    %c0_i32_1 = arith.constant 0 : i32
    %c0_i32_2 = arith.constant 0 : i32
    return %arg1, %c0_i32, %c0_i32_0, %c0_i32_1 : i32, i32, i32, i32
  }
  func.func @transform_4(%arg0: i32, %arg1: i32) -> (i32, i32, i32, i32) {
    %c0_i32 = arith.constant 0 : i32
    %c0_i32_0 = arith.constant 0 : i32
    %c0_i32_1 = arith.constant 0 : i32
    %c0_i32_2 = arith.constant 0 : i32
    return %arg1, %c0_i32, %c0_i32_0, %c0_i32_1 : i32, i32, i32, i32
  }
  func.func @transform_5(%arg0: i32, %arg1: i32) -> (i32, i32, i32, i32) {
    %c0_i32 = arith.constant 0 : i32
    %c0_i32_0 = arith.constant 0 : i32
    %c0_i32_1 = arith.constant 0 : i32
    %c0_i32_2 = arith.constant 0 : i32
    return %arg1, %c0_i32, %c0_i32_0, %c0_i32_1 : i32, i32, i32, i32
  }
  func.func @transform_6(%arg0: i32, %arg1: i32) -> (i32, i32, i32) {
    %c0_i32 = arith.constant 0 : i32
    %c0_i32_0 = arith.constant 0 : i32
    %c0_i32_1 = arith.constant 0 : i32
    return %arg1, %c0_i32, %c0_i32_0 : i32, i32, i32
  }
  func.func @transform_7(%arg0: i32, %arg1: i32) -> (i32, i32, i32) {
    %c0_i32 = arith.constant 0 : i32
    %c0_i32_0 = arith.constant 0 : i32
    %c0_i32_1 = arith.constant 0 : i32
    return %arg1, %c0_i32, %c0_i32_0 : i32, i32, i32
  }
  func.func @transform_8(%arg0: i32, %arg1: i32) -> (i32, i32, i32) {
    %c0_i32 = arith.constant 0 : i32
    %c0_i32_0 = arith.constant 0 : i32
    %c0_i32_1 = arith.constant 0 : i32
    return %arg1, %c0_i32, %c0_i32_0 : i32, i32, i32
  }
  func.func @transform_9(%arg0: i32, %arg1: i32) -> (i32, i32, i32) {
    %c0_i32 = arith.constant 0 : i32
    %c0_i32_0 = arith.constant 0 : i32
    %c0_i32_1 = arith.constant 0 : i32
    return %arg1, %c0_i32, %c0_i32_0 : i32, i32, i32
  }
  func.func @transform_10(%arg0: i32, %arg1: i32) -> (i32, i32) {
    %c0_i32 = arith.constant 0 : i32
    %c0_i32_0 = arith.constant 0 : i32
    %c0_i32_1 = arith.constant 0 : i32
    return %c0_i32, %c0_i32_0 : i32, i32
  }
  func.func @transform_11(%arg0: i32, %arg1: i32) -> (i32, i32) {
    %c0_i32 = arith.constant 0 : i32
    %c0_i32_0 = arith.constant 0 : i32
    %c0_i32_1 = arith.constant 0 : i32
    return %c0_i32, %c0_i32_0 : i32, i32
  }
  func.func @transform_12(%arg0: i32, %arg1: i32) -> (i32, i32, i32) {
    %c0_i32 = arith.constant 0 : i32
    %c0_i32_0 = arith.constant 0 : i32
    %c0_i32_1 = arith.constant 0 : i32
    return %arg0, %c0_i32, %c0_i32_0 : i32, i32, i32
  }
}

</mosaic_0001>

<llo_original>
// kernel: text_encoder_forward.1
$region0: #{text_encoder_forward.1}
  #allocation0 [shape = 'u32[]', space=smem, size = 0x4, offset = 0x4, fixed_abs, tag = 'smem constant byte address 0x4 - core index']
  #allocation1 [shape = 'u32[144,128]{1,0:T(1,128)}', space=vmem, size = 0x12000, scoped, tag = 'internal scratch']
  #allocation2 [shape = 'f32[8,32]{1,0:T(8,128)}', space=vmem, size = 0x1000, scoped, tag = 'scratch operand']
  #allocation3 [shape = 'f32[8,8]{1,0:T(8,128)}', space=vmem, size = 0x1000, scoped, tag = 'scratch operand']
  %s0 = inlined_call_operand.vmem [shape: f32[2,8,32], index: 0, kind: input, shape index: {}]
  %s1 = inlined_call_operand.vmem [shape: s32[2,1,8], index: 1, kind: input, shape index: {}]
  %s2 = inlined_call_operand.vmem [shape: f32[2,8,1], index: 2, kind: input, shape index: {}]
  %s3 = inlined_call_operand.vmem [shape: bf16[2,6,32,16], index: 3, kind: input, shape index: {}]
  %s4 = inlined_call_operand.vmem [shape: f32[2,6,1,16], index: 4, kind: input, shape index: {}]
  %s5 = inlined_call_operand.vmem [shape: bf16[2,2,16,32], index: 5, kind: input, shape index: {}]
  %s6 = inlined_call_operand.vmem [shape: bf16[2,32,128], index: 6, kind: input, shape index: {}]
  %s7 = inlined_call_operand.vmem [shape: f32[2,1,128], index: 7, kind: input, shape index: {}]
  %s8 = inlined_call_operand.vmem [shape: bf16[2,128,32], index: 8, kind: input, shape index: {}]
  %s9 = inlined_call_operand.vmem [shape: f32[2,6,32], index: 9, kind: input, shape index: {}]
  %s10 = inlined_call_operand.vmem [shape: f32[2,32], index: 10, kind: input, shape index: {}]
  %s11 = inlined_call_operand.vmem [shape: bf16[32,128], index: 11, kind: input, shape index: {}]
  %s12 = inlined_call_operand.hbm [shape: f32[2,1,128], index: 12, kind: output, shape index: {}]
  %s13 = sld [smem:[#allocation0]]
  $region89: #{text_encoder_forward.1} parent=0
    _
  %s15 = ssub.s32 1, %s13
  %s16 = scalar_select 0, %s15, %s13
  $region1: #{text_encoder_forward.1} parent=0
    #allocation4 [shape = 'u8[1024]{0}', space=vmem, size = 0x400, scoped, tag = 'output window, operand 0']
    #allocation5 [shape = 's32[2]{0}', space=sflag, size = 0x8, scoped, tag = 'scoped memory for text_encoder_forward.1']
    %17 = vsyncpa [#allocation5], 0
    %s18 = scalar_lea.sflag [#allocation5], 1
    %19 = vsyncpa %s18, 0
    loop: start=0, step=1, limit=6
    $region2: #{text_encoder_forward.1} parent=1 // loop_pre_header
      _
    $region3: #{text_encoder_forward.1} parent=1 // loop_header
      %s21 = sphi 0, %s25
      %p22 = scmp.ge.s32.totalorder %s21, 6
      %s28 = sphi 0, %s40
      %s29 = sphi 0, %s36
      %s30 = sphi 0, %s28
      %s31 = sphi 0, %s29
      %s32 = sphi 0, %s30
      %s33 = sphi 0, %s31
      %s43 = sphi 0, %s45
      %s46 = sphi 0, %s43
      %s47 = sphi 0, %s46
      %s63 = sphi 0, %s47
      %s69 = sphi 0, %s71
      %s72 = sphi 0, %s69
      %s73 = sphi 0, %s72
      %s89 = sphi 0, %s73
      %s95 = sphi 0, %s97
      %s98 = sphi 0, %s95
      %s99 = sphi 0, %s98
      %s115 = sphi 0, %s99
      %s121 = sphi 0, %s123
      %s124 = sphi 0, %s121
      %s125 = sphi 0, %s124
      %s141 = sphi 0, %s125
      %s147 = sphi 0, %s149
      %s150 = sphi 0, %s147
      %s151 = sphi 0, %s150
      %s167 = sphi 0, %s151
      %s173 = sphi 0, %s175
      %s176 = sphi 0, %s173
      %s177 = sphi 0, %s176
      %s193 = sphi 0, %s177
      %s199 = sphi 0, %s201
      %s202 = sphi 0, %s199
      %s203 = sphi 0, %s202
      %s219 = sphi 0, %s203
      %s225 = sphi 0, %s227
      %s228 = sphi 0, %s225
      %s229 = sphi 0, %s228
      %s245 = sphi 0, %s229
      %s251 = sphi 0, %s253
      %s254 = sphi 0, %s251
      %s255 = sphi 0, %s254
      %s271 = sphi 0, %s255
      %s277 = sphi 0, %s279
      %s280 = sphi 0, %s277
      %s281 = sphi 0, %s280
      %s297 = sphi 0, %s281
      %s301 = sphi 0, %s301
      %s303 = sphi 0, %s301
      %s304 = sphi 0, %s303
      %s318 = sphi 0, %s304
      %s322 = sphi 0, %s322
      %s324 = sphi 0, %s322
      %s325 = sphi 0, %s324
      %s339 = sphi 0, %s325
      %s345 = sphi 0, %s347
      %s348 = sphi 0, %s345
      %s349 = sphi 0, %s348
      %s365 = sphi 0, %s349
    $region4: #{text_encoder_forward.1} parent=1 // loop_header_branch
      %24 = sbr.rel (%p22) target = $region8
    $region5: #{text_encoder_forward.1} parent=1 // loop_body
      %s26 = ssub.s32 %s21, 1
      %s27 = ssub.s32 %s21, 2
      %s34 = sadd.s32 1, %s29
      %p35 = scmp.ge.s32.totalorder %s34, 2
      %s36 = scalar_select %p35, 0, %s34
      %s37 = sadd.s32 1, %s28
      %s38 = scalar_select %p35, %s37, %s28
      %p39 = scmp.ge.s32.totalorder %s38, 2
      %s40 = scalar_select %p39, 0, %s38
      %s41 = ssub.s32 %s28, %s40
      %p42 = scmp.eq.s32.totalorder %s41, 0
      %s44 = sadd.s32 %s43, 1
      %s45 = scalar_select %p42, %s43, %s44
      %p48 = pneg %p42
      %p49 = scmp.eq.s32.totalorder %s21, 3
      %p50 = por %p48, %p49
      %p51 = scmp.ne.s32.totalorder %s43, %s46
      %p52 = scmp.eq.s32.totalorder %s21, 0
      %p53 = por %p51, %p52
      %p54 = scmp.ne.s32.totalorder %s43, %s46
      %p55 = scmp.eq.s32.totalorder %s26, 3
      %p56 = por %p54, %p55
      %p57 = scmp.ne.s32.totalorder %s46, %s47
      %p58 = scmp.eq.s32.totalorder %s26, 0
      %p59 = por %p57, %p58
      %p60 = scmp.ne.s32.totalorder %s46, %s47
      %p61 = scmp.eq.s32.totalorder %s27, 3
      %p62 = por %p60, %p61
      %p64 = scmp.ne.s32.totalorder %s47, %s63
      %p65 = scmp.eq.s32.totalorder %s27, 0
      %p66 = por %p64, %p65
      %s67 = ssub.s32 %s28, %s40
      %p68 = scmp.eq.s32.totalorder %s67, 0
      %s70 = sadd.s32 %s69, 1
      %s71 = scalar_select %p68, %s69, %s70
      %p74 = pneg %p68
      %p75 = scmp.eq.s32.totalorder %s21, 3
      %p76 = por %p74, %p75
      %p77 = scmp.ne.s32.totalorder %s69, %s72
      %p78 = scmp.eq.s32.totalorder %s21, 0
      %p79 = por %p77, %p78
      %p80 = scmp.ne.s32.totalorder %s69, %s72
      %p81 = scmp.eq.s32.totalorder %s26, 3
      %p82 = por %p80, %p81
      %p83 = scmp.ne.s32.totalorder %s72, %s73
      %p84 = scmp.eq.s32.totalorder %s26, 0
      %p85 = por %p83, %p84
      %p86 = scmp.ne.s32.totalorder %s72, %s73
      %p87 = scmp.eq.s32.totalorder %s27, 3
      %p88 = por %p86, %p87
      %p90 = scmp.ne.s32.totalorder %s73, %s89
      %p91 = scmp.eq.s32.totalorder %s27, 0
      %p92 = por %p90, %p91
      %s93 = ssub.s32 %s28, %s40
      %p94 = scmp.eq.s32.totalorder %s93, 0
      %s96 = sadd.s32 %s95, 1
      %s97 = scalar_select %p94, %s95, %s96
      %p100 = pneg %p94
      %p101 = scmp.eq.s32.totalorder %s21, 3
      %p102 = por %p100, %p101
      %p103 = scmp.ne.s32.totalorder %s95, %s98
      %p104 = scmp.eq.s32.totalorder %s21, 0
      %p105 = por %p103, %p104
      %p106 = scmp.ne.s32.totalorder %s95, %s98
      %p107 = scmp.eq.s32.totalorder %s26, 3
      %p108 = por %p106, %p107
      %p109 = scmp.ne.s32.totalorder %s98, %s99
      %p110 = scmp.eq.s32.totalorder %s26, 0
      %p111 = por %p109, %p110
      %p112 = scmp.ne.s32.totalorder %s98, %s99
      %p113 = scmp.eq.s32.totalorder %s27, 3
      %p114 = por %p112, %p113
      %p116 = scmp.ne.s32.totalorder %s99, %s115
      %p117 = scmp.eq.s32.totalorder %s27, 0
      %p118 = por %p116, %p117
      %s119 = ssub.s32 %s29, %s36
      %p120 = scmp.eq.s32.totalorder %s119, 0
      %s122 = sadd.s32 %s121, 1
      %s123 = scalar_select %p120, %s121, %s122
      %p126 = pneg %p120
      %p127 = scmp.eq.s32.totalorder %s21, 3
      %p128 = por %p126, %p127
      %p129 = scmp.ne.s32.totalorder %s121, %s124
      %p130 = scmp.eq.s32.totalorder %s21, 0
      %p131 = por %p129, %p130
      %p132 = scmp.ne.s32.totalorder %s121, %s124
      %p133 = scmp.eq.s32.totalorder %s26, 3
      %p134 = por %p132, %p133
      %p135 = scmp.ne.s32.totalorder %s124, %s125
      %p136 = scmp.eq.s32.totalorder %s26, 0
      %p137 = por %p135, %p136
      %p138 = scmp.ne.s32.totalorder %s124, %s125
      %p139 = scmp.eq.s32.totalorder %s27, 3
      %p140 = por %p138, %p139
      %p142 = scmp.ne.s32.totalorder %s125, %s141
      %p143 = scmp.eq.s32.totalorder %s27, 0
      %p144 = por %p142, %p143
      %s145 = ssub.s32 %s29, %s36
      %p146 = scmp.eq.s32.totalorder %s145, 0
      %s148 = sadd.s32 %s147, 1
      %s149 = scalar_select %p146, %s147, %s148
      %p152 = pneg %p146
      %p153 = scmp.eq.s32.totalorder %s21, 3
      %p154 = por %p152, %p153
      %p155 = scmp.ne.s32.totalorder %s147, %s150
      %p156 = scmp.eq.s32.totalorder %s21, 0
      %p157 = por %p155, %p156
      %p158 = scmp.ne.s32.totalorder %s147, %s150
      %p159 = scmp.eq.s32.totalorder %s26, 3
      %p160 = por %p158, %p159
      %p161 = scmp.ne.s32.totalorder %s150, %s151
      %p162 = scmp.eq.s32.totalorder %s26, 0
      %p163 = por %p161, %p162
      %p164 = scmp.ne.s32.totalorder %s150, %s151
      %p165 = scmp.eq.s32.totalorder %s27, 3
      %p166 = por %p164, %p165
      %p168 = scmp.ne.s32.totalorder %s151, %s167
      %p169 = scmp.eq.s32.totalorder %s27, 0
      %p170 = por %p168, %p169
      %s171 = ssub.s32 %s29, %s36
      %p172 = scmp.eq.s32.totalorder %s171, 0
      %s174 = sadd.s32 %s173, 1
      %s175 = scalar_select %p172, %s173, %s174
      %p178 = pneg %p172
      %p179 = scmp.eq.s32.totalorder %s21, 3
      %p180 = por %p178, %p179
      %p181 = scmp.ne.s32.totalorder %s173, %s176
      %p182 = scmp.eq.s32.totalorder %s21, 0
      %p183 = por %p181, %p182
      %p184 = scmp.ne.s32.totalorder %s173, %s176
      %p185 = scmp.eq.s32.totalorder %s26, 3
      %p186 = por %p184, %p185
      %p187 = scmp.ne.s32.totalorder %s176, %s177
      %p188 = scmp.eq.s32.totalorder %s26, 0
      %p189 = por %p187, %p188
      %p190 = scmp.ne.s32.totalorder %s176, %s177
      %p191 = scmp.eq.s32.totalorder %s27, 3
      %p192 = por %p190, %p191
      %p194 = scmp.ne.s32.totalorder %s177, %s193
      %p195 = scmp.eq.s32.totalorder %s27, 0
      %p196 = por %p194, %p195
      %s197 = ssub.s32 %s29, %s36
      %p198 = scmp.eq.s32.totalorder %s197, 0
      %s200 = sadd.s32 %s199, 1
      %s201 = scalar_select %p198, %s199, %s200
      %p204 = pneg %p198
      %p205 = scmp.eq.s32.totalorder %s21, 3
      %p206 = por %p204, %p205
      %p207 = scmp.ne.s32.totalorder %s199, %s202
      %p208 = scmp.eq.s32.totalorder %s21, 0
      %p209 = por %p207, %p208
      %p210 = scmp.ne.s32.totalorder %s199, %s202
      %p211 = scmp.eq.s32.totalorder %s26, 3
      %p212 = por %p210, %p211
      %p213 = scmp.ne.s32.totalorder %s202, %s203
      %p214 = scmp.eq.s32.totalorder %s26, 0
      %p215 = por %p213, %p214
      %p216 = scmp.ne.s32.totalorder %s202, %s203
      %p217 = scmp.eq.s32.totalorder %s27, 3
      %p218 = por %p216, %p217
      %p220 = scmp.ne.s32.totalorder %s203, %s219
      %p221 = scmp.eq.s32.totalorder %s27, 0
      %p222 = por %p220, %p221
      %s223 = ssub.s32 %s29, %s36
      %p224 = scmp.eq.s32.totalorder %s223, 0
      %s226 = sadd.s32 %s225, 1
      %s227 = scalar_select %p224, %s225, %s226
      %p230 = pneg %p224
      %p231 = scmp.eq.s32.totalorder %s21, 3
      %p232 = por %p230, %p231
      %p233 = scmp.ne.s32.totalorder %s225, %s228
      %p234 = scmp.eq.s32.totalorder %s21, 0
      %p235 = por %p233, %p234
      %p236 = scmp.ne.s32.totalorder %s225, %s228
      %p237 = scmp.eq.s32.totalorder %s26, 3
      %p238 = por %p236, %p237
      %p239 = scmp.ne.s32.totalorder %s228, %s229
      %p240 = scmp.eq.s32.totalorder %s26, 0
      %p241 = por %p239, %p240
      %p242 = scmp.ne.s32.totalorder %s228, %s229
      %p243 = scmp.eq.s32.totalorder %s27, 3
      %p244 = por %p242, %p243
      %p246 = scmp.ne.s32.totalorder %s229, %s245
      %p247 = scmp.eq.s32.totalorder %s27, 0
      %p248 = por %p246, %p247
      %s249 = ssub.s32 %s29, %s36
      %p250 = scmp.eq.s32.totalorder %s249, 0
      %s252 = sadd.s32 %s251, 1
      %s253 = scalar_select %p250, %s251, %s252
      %p256 = pneg %p250
      %p257 = scmp.eq.s32.totalorder %s21, 3
      %p258 = por %p256, %p257
      %p259 = scmp.ne.s32.totalorder %s251, %s254
      %p260 = scmp.eq.s32.totalorder %s21, 0
      %p261 = por %p259, %p260
      %p262 = scmp.ne.s32.totalorder %s251, %s254
      %p263 = scmp.eq.s32.totalorder %s26, 3
      %p264 = por %p262, %p263
      %p265 = scmp.ne.s32.totalorder %s254, %s255
      %p266 = scmp.eq.s32.totalorder %s26, 0
      %p267 = por %p265, %p266
      %p268 = scmp.ne.s32.totalorder %s254, %s255
      %p269 = scmp.eq.s32.totalorder %s27, 3
      %p270 = por %p268, %p269
      %p272 = scmp.ne.s32.totalorder %s255, %s271
      %p273 = scmp.eq.s32.totalorder %s27, 0
      %p274 = por %p272, %p273
      %s275 = ssub.s32 %s29, %s36
      %p276 = scmp.eq.s32.totalorder %s275, 0
      %s278 = sadd.s32 %s277, 1
      %s279 = scalar_select %p276, %s277, %s278
      %p282 = pneg %p276
      %p283 = scmp.eq.s32.totalorder %s21, 3
      %p284 = por %p282, %p283
      %p285 = scmp.ne.s32.totalorder %s277, %s280
      %p286 = scmp.eq.s32.totalorder %s21, 0
      %p287 = por %p285, %p286
      %p288 = scmp.ne.s32.totalorder %s277, %s280
      %p289 = scmp.eq.s32.totalorder %s26, 3
      %p290 = por %p288, %p289
      %p291 = scmp.ne.s32.totalorder %s280, %s281
      %p292 = scmp.eq.s32.totalorder %s26, 0
      %p293 = por %p291, %p292
      %p294 = scmp.ne.s32.totalorder %s280, %s281
      %p295 = scmp.eq.s32.totalorder %s27, 3
      %p296 = por %p294, %p295
      %p298 = scmp.ne.s32.totalorder %s281, %s297
      %p299 = scmp.eq.s32.totalorder %s27, 0
      %p300 = por %p298, %p299
      %s302 = sadd.s32 %s301, 1
      %p305 = scmp.eq.s32.totalorder %s21, 3
      %p306 = scmp.ne.s32.totalorder %s301, %s303
      %p307 = scmp.eq.s32.totalorder %s21, 0
      %p308 = por %p306, %p307
      %p309 = scmp.ne.s32.totalorder %s301, %s303
      %p310 = scmp.eq.s32.totalorder %s26, 3
      %p311 = por %p309, %p310
      %p312 = scmp.ne.s32.totalorder %s303, %s304
      %p313 = scmp.eq.s32.totalorder %s26, 0
      %p314 = por %p312, %p313
      %p315 = scmp.ne.s32.totalorder %s303, %s304
      %p316 = scmp.eq.s32.totalorder %s27, 3
      %p317 = por %p315, %p316
      %p319 = scmp.ne.s32.totalorder %s304, %s318
      %p320 = scmp.eq.s32.totalorder %s27, 0
      %p321 = por %p319, %p320
      %s323 = sadd.s32 %s322, 1
      %p326 = scmp.eq.s32.totalorder %s21, 3
      %p327 = scmp.ne.s32.totalorder %s322, %s324
      %p328 = scmp.eq.s32.totalorder %s21, 0
      %p329 = por %p327, %p328
      %p330 = scmp.ne.s32.totalorder %s322, %s324
      %p331 = scmp.eq.s32.totalorder %s26, 3
      %p332 = por %p330, %p331
      %p333 = scmp.ne.s32.totalorder %s324, %s325
      %p334 = scmp.eq.s32.totalorder %s26, 0
      %p335 = por %p333, %p334
      %p336 = scmp.ne.s32.totalorder %s324, %s325
      %p337 = scmp.eq.s32.totalorder %s27, 3
      %p338 = por %p336, %p337
      %p340 = scmp.ne.s32.totalorder %s325, %s339
      %p341 = scmp.eq.s32.totalorder %s27, 0
      %p342 = por %p340, %p341
      %s343 = ssub.s32 %s28, %s40
      %p344 = scmp.eq.s32.totalorder %s343, 0
      %s346 = sadd.s32 %s345, 1
      %s347 = scalar_select %p344, %s345, %s346
      %p350 = pneg %p344
      %p351 = scmp.eq.s32.totalorder %s21, 3
      %p352 = por %p350, %p351
      %p353 = scmp.ne.s32.totalorder %s345, %s348
      %p354 = scmp.eq.s32.totalorder %s21, 0
      %p355 = por %p353, %p354
      %p356 = scmp.ne.s32.totalorder %s345, %s348
      %p357 = scmp.eq.s32.totalorder %s26, 3
      %p358 = por %p356, %p357
      %p359 = scmp.ne.s32.totalorder %s348, %s349
      %p360 = scmp.eq.s32.totalorder %s26, 0
      %p361 = por %p359, %p360
      %p362 = scmp.ne.s32.totalorder %s348, %s349
      %p363 = scmp.eq.s32.totalorder %s27, 3
      %p364 = por %p362, %p363
      %p366 = scmp.ne.s32.totalorder %s349, %s365
      %p367 = scmp.eq.s32.totalorder %s27, 0
      %p368 = por %p366, %p367
      %p369 = scmp.le.s32.totalorder 1, %s21
      %p370 = scmp.lt.s32.totalorder %s21, 5
      %p371 = pnand %p369, %p370
      %p372 = pneg %p371
      // Predicated region
      $region9: #{text_encoder_forward.1} parent=5 // pred_check
        _
      $region10: #{text_encoder_forward.1} parent=5 // pred_check_branch
        %374 = sbr.rel (%p371) target = $region12
      $region11: #{text_encoder_forward.1} parent=5 // pred_region
        %s375 = ssub.s32 %s21, 1
        // Predicated region
        $region13: #{text_encoder_forward.1} parent=11 // pred_check
          %p376 = pneg %p314
        $region14: #{text_encoder_forward.1} parent=11 // pred_check_branch
          %378 = sbr.rel (%p376) target = $region16
        $region15: #{text_encoder_forward.1} parent=11 // pred_region
          _
        $region16: #{text_encoder_forward.1} parent=11 // pred_fallthru
          _
        // Predicated region
        $region17: #{text_encoder_forward.1} parent=11 // pred_check
          %p379 = pneg %p335
        $region18: #{text_encoder_forward.1} parent=11 // pred_check_branch
          %381 = sbr.rel (%p379) target = $region20
        $region19: #{text_encoder_forward.1} parent=11 // pred_region
          _
        $region20: #{text_encoder_forward.1} parent=11 // pred_fallthru
          _
      $region12: #{text_encoder_forward.1} parent=5 // pred_fallthru
        _
      %p382 = scmp.lt.s32.totalorder %s21, 4
      // Predicated region
      $region21: #{text_encoder_forward.1} parent=5 // pred_check
        %p383 = pneg %p382
      $region22: #{text_encoder_forward.1} parent=5 // pred_check_branch
        %385 = sbr.rel (%p383) target = $region24
      $region23: #{text_encoder_forward.1} parent=5 // pred_region
        // Predicated region
        $region25: #{text_encoder_forward.1} parent=23 // pred_check
          %p386 = pneg %p53
        $region26: #{text_encoder_forward.1} parent=23 // pred_check_branch
          %388 = sbr.rel (%p386) target = $region28
        $region27: #{text_encoder_forward.1} parent=23 // pred_region
          %p389 = scmp.lt.s32.totalorder %s28, 1
          %s390 = scalar_select %p389, %s28, 1
          %s391 = smul.addr %s390, 8
          %s392 = scalar_lea.vmem %s0, %s391
        $region28: #{text_encoder_forward.1} parent=23 // pred_fallthru
          _
        // Predicated region
        $region29: #{text_encoder_forward.1} parent=23 // pred_check
          %p393 = pneg %p79
        $region30: #{text_encoder_forward.1} parent=23 // pred_check_branch
          %395 = sbr.rel (%p393) target = $region32
        $region31: #{text_encoder_forward.1} parent=23 // pred_region
          %p396 = scmp.lt.s32.totalorder %s28, 1
          %s397 = scalar_select %p396, %s28, 1
          %s398 = scalar_lea.vmem %s1, %s397
        $region32: #{text_encoder_forward.1} parent=23 // pred_fallthru
          _
        // Predicated region
        $region33: #{text_encoder_forward.1} parent=23 // pred_check
          %p399 = pneg %p105
        $region34: #{text_encoder_forward.1} parent=23 // pred_check_branch
          %401 = sbr.rel (%p399) target = $region36
        $region35: #{text_encoder_forward.1} parent=23 // pred_region
          %p402 = scmp.lt.s32.totalorder %s28, 1
          %s403 = scalar_select %p402, %s28, 1
          %s404 = smul.addr %s403, 8
          %s405 = scalar_lea.vmem %s2, %s404
        $region36: #{text_encoder_forward.1} parent=23 // pred_fallthru
          _
        // Predicated region
        $region37: #{text_encoder_forward.1} parent=23 // pred_check
          %p406 = pneg %p131
        $region38: #{text_encoder_forward.1} parent=23 // pred_check_branch
          %408 = sbr.rel (%p406) target = $region40
        $region39: #{text_encoder_forward.1} parent=23 // pred_region
          %p409 = scmp.lt.s32.totalorder %s29, 1
          %s410 = scalar_select %p409, %s29, 1
          %s411 = smul.addr %s410, 24
          %s412 = smul.addr %s411, 4
          %s413 = scalar_lea.vmem %s3, %s412
        $region40: #{text_encoder_forward.1} parent=23 // pred_fallthru
          _
        // Predicated region
        $region41: #{text_encoder_forward.1} parent=23 // pred_check
          %p414 = pneg %p157
        $region42: #{text_encoder_forward.1} parent=23 // pred_check_branch
          %416 = sbr.rel (%p414) target = $region44
        $region43: #{text_encoder_forward.1} parent=23 // pred_region
          %p417 = scmp.lt.s32.totalorder %s29, 1
          %s418 = scalar_select %p417, %s29, 1
          %s419 = smul.addr %s418, 6
          %s420 = scalar_lea.vmem %s4, %s419
        $region44: #{text_encoder_forward.1} parent=23 // pred_fallthru
          _
        // Predicated region
        $region45: #{text_encoder_forward.1} parent=23 // pred_check
          %p421 = pneg %p183
        $region46: #{text_encoder_forward.1} parent=23 // pred_check_branch
          %423 = sbr.rel (%p421) target = $region48
        $region47: #{text_encoder_forward.1} parent=23 // pred_region
          %p424 = scmp.lt.s32.totalorder %s29, 1
          %s425 = scalar_select %p424, %s29, 1
          %s426 = smul.addr %s425, 4
          %s427 = smul.addr %s426, 4
          %s428 = scalar_lea.vmem %s5, %s427
        $region48: #{text_encoder_forward.1} parent=23 // pred_fallthru
          _
        // Predicated region
        $region49: #{text_encoder_forward.1} parent=23 // pred_check
          %p429 = pneg %p209
        $region50: #{text_encoder_forward.1} parent=23 // pred_check_branch
          %431 = sbr.rel (%p429) target = $region52
        $region51: #{text_encoder_forward.1} parent=23 // pred_region
          %p432 = scmp.lt.s32.totalorder %s29, 1
          %s433 = scalar_select %p432, %s29, 1
          %s434 = smul.addr %s433, 4
          %s435 = smul.addr %s434, 4
          %s436 = scalar_lea.vmem %s6, %s435
        $region52: #{text_encoder_forward.1} parent=23 // pred_fallthru
          _
        // Predicated region
        $region53: #{text_encoder_forward.1} parent=23 // pred_check
          %p437 = pneg %p235
        $region54: #{text_encoder_forward.1} parent=23 // pred_check_branch
          %439 = sbr.rel (%p437) target = $region56
        $region55: #{text_encoder_forward.1} parent=23 // pred_region
          %p440 = scmp.lt.s32.totalorder %s29, 1
          %s441 = scalar_select %p440, %s29, 1
          %s442 = scalar_lea.vmem %s7, %s441
        $region56: #{text_encoder_forward.1} parent=23 // pred_fallthru
          _
        // Predicated region
        $region57: #{text_encoder_forward.1} parent=23 // pred_check
          %p443 = pneg %p261
        $region58: #{text_encoder_forward.1} parent=23 // pred_check_branch
          %445 = sbr.rel (%p443) target = $region60
        $region59: #{text_encoder_forward.1} parent=23 // pred_region
          %p446 = scmp.lt.s32.totalorder %s29, 1
          %s447 = scalar_select %p446, %s29, 1
          %s448 = smul.addr %s447, 16
          %s449 = smul.addr %s448, 4
          %s450 = scalar_lea.vmem %s8, %s449
        $region60: #{text_encoder_forward.1} parent=23 // pred_fallthru
          _
        // Predicated region
        $region61: #{text_encoder_forward.1} parent=23 // pred_check
          %p451 = pneg %p287
        $region62: #{text_encoder_forward.1} parent=23 // pred_check_branch
          %453 = sbr.rel (%p451) target = $region64
        $region63: #{text_encoder_forward.1} parent=23 // pred_region
          %p454 = scmp.lt.s32.totalorder %s29, 1
          %s455 = scalar_select %p454, %s29, 1
          %s456 = smul.addr %s455, 8
          %s457 = scalar_lea.vmem %s9, %s456
        $region64: #{text_encoder_forward.1} parent=23 // pred_fallthru
          _
      $region24: #{text_encoder_forward.1} parent=5 // pred_fallthru
        _
      %p458 = scmp.le.s32.totalorder 1, %s21
      %p459 = scmp.lt.s32.totalorder %s21, 5
      %p460 = pnand %p458, %p459
      %p461 = pneg %p460
      // Predicated region
      $region65: #{text_encoder_forward.1} parent=5 // pred_check
        _
      $region66: #{text_encoder_forward.1} parent=5 // pred_check_branch
        %463 = sbr.rel (%p460) target = $region68
      $region67: #{text_encoder_forward.1} parent=5 // pred_region
        %s464 = ssub.s32 %s21, 1
        %p465 = scmp.lt.s32.totalorder %s30, 1
        %s466 = scalar_select %p465, %s30, 1
        %s467 = smul.addr %s466, 8
        %s468 = scalar_lea.vmem %s0, %s467
        %p469 = pneg %p59
        %p470 = pneg %p56
        %p471 = scmp.lt.s32.totalorder %s30, 1
        %s472 = scalar_select %p471, %s30, 1
        %s473 = scalar_lea.vmem %s1, %s472
        %p474 = pneg %p85
        %p475 = pneg %p82
        %p476 = scmp.lt.s32.totalorder %s30, 1
        %s477 = scalar_select %p476, %s30, 1
        %s478 = smul.addr %s477, 8
        %s479 = scalar_lea.vmem %s2, %s478
        %p480 = pneg %p111
        %p481 = pneg %p108
        %p482 = scmp.lt.s32.totalorder %s31, 1
        %s483 = scalar_select %p482, %s31, 1
        %s484 = smul.addr %s483, 24
        %s485 = smul.addr %s484, 4
        %s486 = scalar_lea.vmem %s3, %s485
        %p487 = pneg %p137
        %p488 = pneg %p134
        %p489 = scmp.lt.s32.totalorder %s31, 1
        %s490 = scalar_select %p489, %s31, 1
        %s491 = smul.addr %s490, 6
        %s492 = scalar_lea.vmem %s4, %s491
        %p493 = pneg %p163
        %p494 = pneg %p160
        %p495 = scmp.lt.s32.totalorder %s31, 1
        %s496 = scalar_select %p495, %s31, 1
        %s497 = smul.addr %s496, 4
        %s498 = smul.addr %s497, 4
        %s499 = scalar_lea.vmem %s5, %s498
        %p500 = pneg %p189
        %p501 = pneg %p186
        %p502 = scmp.lt.s32.totalorder %s31, 1
        %s503 = scalar_select %p502, %s31, 1
        %s504 = smul.addr %s503, 4
        %s505 = smul.addr %s504, 4
        %s506 = scalar_lea.vmem %s6, %s505
        %p507 = pneg %p215
        %p508 = pneg %p212
        %p509 = scmp.lt.s32.totalorder %s31, 1
        %s510 = scalar_select %p509, %s31, 1
        %s511 = scalar_lea.vmem %s7, %s510
        %p512 = pneg %p241
        %p513 = pneg %p238
        %p514 = scmp.lt.s32.totalorder %s31, 1
        %s515 = scalar_select %p514, %s31, 1
        %s516 = smul.addr %s515, 16
        %s517 = smul.addr %s516, 4
        %s518 = scalar_lea.vmem %s8, %s517
        %p519 = pneg %p267
        %p520 = pneg %p264
        %p521 = scmp.lt.s32.totalorder %s31, 1
        %s522 = scalar_select %p521, %s31, 1
        %s523 = smul.addr %s522, 8
        %s524 = scalar_lea.vmem %s9, %s523
        %p525 = pneg %p293
        %p526 = pneg %p290
        %p527 = pneg %p314
        %p528 = pneg %p311
        %p529 = pneg %p335
        %p530 = pneg %p332
        %p531 = pneg %p361
        %p532 = pneg %p358
        %s533 = sand.u32 %s348, 1
        %s534 = scalar_lea.sflag [#allocation5], %s533
        %s535 = sand.u32 %s348, 1
        %s536 = scalar_lea.vmem [#allocation4], %s535
        %p537 = scmp.lt.s32.totalorder %s30, 1
        %s538 = scalar_select %p537, %s30, 1
        %s539 = smul.addr %s538, 8
        %s540 = scalar_lea.vmem %s0, %s539
        %p541 = scmp.lt.s32.totalorder %s30, 1
        %s542 = scalar_select %p541, %s30, 1
        %s543 = scalar_lea.vmem %s1, %s542
        %p544 = scmp.lt.s32.totalorder %s30, 1
        %s545 = scalar_select %p544, %s30, 1
        %s546 = smul.addr %s545, 8
        %s547 = scalar_lea.vmem %s2, %s546
        %p548 = scmp.lt.s32.totalorder %s31, 1
        %s549 = scalar_select %p548, %s31, 1
        %s550 = smul.addr %s549, 24
        %s551 = smul.addr %s550, 4
        %s552 = scalar_lea.vmem %s3, %s551
        %p553 = scmp.lt.s32.totalorder %s31, 1
        %s554 = scalar_select %p553, %s31, 1
        %s555 = smul.addr %s554, 6
        %s556 = scalar_lea.vmem %s4, %s555
        %p557 = scmp.lt.s32.totalorder %s31, 1
        %s558 = scalar_select %p557, %s31, 1
        %s559 = smul.addr %s558, 4
        %s560 = smul.addr %s559, 4
        %s561 = scalar_lea.vmem %s5, %s560
        %p562 = scmp.lt.s32.totalorder %s31, 1
        %s563 = scalar_select %p562, %s31, 1
        %s564 = smul.addr %s563, 4
        %s565 = smul.addr %s564, 4
        %s566 = scalar_lea.vmem %s6, %s565
        %p567 = scmp.lt.s32.totalorder %s31, 1
        %s568 = scalar_select %p567, %s31, 1
        %s569 = scalar_lea.vmem %s7, %s568
        %p570 = scmp.lt.s32.totalorder %s31, 1
        %s571 = scalar_select %p570, %s31, 1
        %s572 = smul.addr %s571, 16
        %s573 = smul.addr %s572, 4
        %s574 = scalar_lea.vmem %s8, %s573
        %p575 = scmp.lt.s32.totalorder %s31, 1
        %s576 = scalar_select %p575, %s31, 1
        %s577 = smul.addr %s576, 8
        %s578 = scalar_lea.vmem %s9, %s577
        %p580 = scmp.eq.s32.totalorder %s31, 0
        // Predicated region
        $region69: #{text_encoder_forward.1} parent=67 // pred_check
          %p581 = pneg %p580
        $region70: #{text_encoder_forward.1} parent=67 // pred_check_branch
          %583 = sbr.rel (%p581) target = $region72
        $region71: #{text_encoder_forward.1} parent=67 // pred_region
          %v584 = vld [vmem:[%s540] sm:$0xff]
          %vm585 = vcmask 261120
          %586 = vst.msk [vmem:[#allocation2] sm:$0xff] %vm585, %v584
          %v587 = vlaneseq
          %v588 = vshrl.u32 %v587, 7
          %v589 = vlaneseq
          %v590 = vand.u32 %v589, 127
          %vm591 = vcmp.le.s32.totalorder %v590, %v588
          %v592 = vld [vmem:[%s543] sm:$0x1]
          %vm593 = vcmp.gt.s32.totalorder %v592, 0
          %v594 = vsel %vm593, 1, 0
          %v595 = vlaneseq
          %v596 = vshrl.u32 %v595, 7
          %v597 = vsub.s32 0, %v596
          %v598 = vrot.slane %v594, %v597
          %vm599 = vcmp.eq.s32.totalorder %v598, 1
          %vm600 = vmand %vm591, %vm599
          %v601 = vsel %vm600, 0.0, -1e+09
          %vm602 = vcmask 64512
          %603 = vst.msk [vmem:[#allocation3] sm:$0xff] %vm602, %v601
        $region72: #{text_encoder_forward.1} parent=67 // pred_fallthru
          _
        %v604 = vld [vmem:[#allocation2] sm:$0xff]
        %v605 = vld [vmem:[#allocation3] sm:$0xff]
        %v606 = vld [vmem:[%s578] sm:$0x3f]
        %vm607 = vcmask 261120
        %v608 = vsel %vm607, %v604, 0.0
        %609 = vadd.xlane.f32.xlu0 %v608
        %v610 = vpop.xlane.xlu0 %609
        %v611 = vrcp.pop 32.0
        %v612 = vmul.f32 %v610, %v611
        %v613 = vsub.f32 %v604, %v612
        %v614 = vmul.f32 %v613, %v613
        %v615 = vsel %vm607, %v614, 0.0
        %616 = vadd.xlane.f32.xlu0 %v615
        %v617 = vpop.xlane.xlu0 %616
        %v618 = vmul.f32 %v617, %v611
        %v619 = vadd.f32 %v618, 1e-05
        %v620 = vrsqrt.pop %v619
        %v621 = vmul.f32 %v613, %v620
        %v622 = vlaneseq
        %v623 = vshrl.u32 %v622, 7
        %v624 = vsub.s32 0, %v623
        %v625 = vrot.slane %v606, %v624
        %v626 = vmul.f32 %v621, %v625
        %v627 = vlaneseq
        %v628 = vshrl.u32 %v627, 7
        %v629 = vsub.s32 1, %v628
        %v630 = vrot.slane %v606, %v629
        %v631 = vadd.f32 %v626, %v630
        %v632 = vpack.c.bf16 %v631, %v631
        %v633 = vld [vmem:[%s552] sm:$0xf]
        %v634 = vld [vmem:[%s552 + $0x4] sm:$0xf]
        %v635 = vld [vmem:[%s552 + $0x8] sm:$0xf]
        %v636 = vld [vmem:[%s552 + $0xc] sm:$0xf]
        %v637 = vld [vmem:[%s552 + $0x10] sm:$0xf]
        %v638 = vld [vmem:[%s552 + $0x14] sm:$0xf]
        %v639 = vld [vmem:[%s552 + $0x18] sm:$0xf]
        %v640 = vld [vmem:[%s552 + $0x1c] sm:$0xf]
        %v641 = vld [vmem:[%s552 + $0x20] sm:$0xf]
        %v642 = vld [vmem:[%s552 + $0x24] sm:$0xf]
        %v643 = vld [vmem:[%s552 + $0x28] sm:$0xf]
        %v644 = vld [vmem:[%s552 + $0x2c] sm:$0xf]
        %v645 = vld [vmem:[%s552 + $0x30] sm:$0xf]
        %v646 = vld [vmem:[%s552 + $0x34] sm:$0xf]
        %v647 = vld [vmem:[%s552 + $0x38] sm:$0xf]
        %v648 = vld [vmem:[%s552 + $0x3c] sm:$0xf]
        %v649 = vld [vmem:[%s552 + $0x40] sm:$0xf]
        %v650 = vld [vmem:[%s552 + $0x44] sm:$0xf]
        %v651 = vld [vmem:[%s552 + $0x48] sm:$0xf]
        %v652 = vld [vmem:[%s552 + $0x4c] sm:$0xf]
        %v653 = vld [vmem:[%s552 + $0x50] sm:$0xf]
        %v654 = vld [vmem:[%s552 + $0x54] sm:$0xf]
        %v655 = vld [vmem:[%s552 + $0x58] sm:$0xf]
        %v656 = vld [vmem:[%s552 + $0x5c] sm:$0xf]
        %v657 = vld [vmem:[%s556] sm:$0x1]
        %v658 = vld [vmem:[%s556 + $0x1] sm:$0x1]
        %v659 = vld [vmem:[%s556 + $0x2] sm:$0x1]
        %v660 = vld [vmem:[%s556 + $0x3] sm:$0x1]
        %v661 = vld [vmem:[%s556 + $0x4] sm:$0x1]
        %v662 = vld [vmem:[%s556 + $0x5] sm:$0x1]
        %v665 = vlaneseq
        %v666 = vshrl.u32 %v665, 7
        %v667 = vsub.s32 0, %v666
        %v668 = vrot.slane %v657, %v667
        %v669 = vlaneseq
        %v670 = vshrl.u32 %v669, 7
        %v671 = vsub.s32 0, %v670
        %v672 = vrot.slane %v658, %v671
        %v679 = vunpack.c.l.b16 %v633
        %v680 = vunpack.c.l.b16 %v634
        %v681 = vunpack.c.l.b16 %v635
        %v682 = vunpack.c.l.b16 %v636
        %v683 = vpack.c.b16 %v680, %v679
        %v684 = vpack.c.b16 %v682, %v681
        %v688 = vsel %vm607, %v632, 0
        %690 = vmatprep.subr.bf16.mxu0 0
        %691 = vmatpush1.bf16.msra.mxu0 %v683
        %692 = vmatprep.subr.bf16.mxu0 0
        %693 = vmatpush1.bf16.msra.mxu0 %v684
        %694 = vmatprep.subr.bf16.mxu0 0
        %695 = vmatpush1.bf16.msra.mxu0 0
        %696 = vmatprep.subr.bf16.mxu0 0
        %697 = vmatpush1.bf16.msra.mxu0 0
        %698 = vmatprep.subr.bf16.mxu0 0
        %699 = vmatpush1.bf16.msra.mxu0 0
        %700 = vmatprep.subr.bf16.mxu0 0
        %701 = vmatpush1.bf16.msra.mxu0 0
        %702 = vmatprep.subr.bf16.mxu0 0
        %703 = vmatpush1.bf16.msra.mxu0 0
        %704 = vmatprep.subr.bf16.mxu0 0
        %705 = vmatpush1.bf16.msra.mxu0 0
        %706 = vmatprep.subr.bf16.mxu0 0
        %707 = vmatpush1.bf16.msra.mxu0 0
        %708 = vmatprep.subr.bf16.mxu0 0
        %709 = vmatpush1.bf16.msra.mxu0 0
        %710 = vmatprep.subr.bf16.mxu0 0
        %711 = vmatpush1.bf16.msra.mxu0 0
        %712 = vmatprep.subr.bf16.mxu0 0
        %713 = vmatpush1.bf16.msra.mxu0 0
        %714 = vmatprep.subr.bf16.mxu0 0
        %715 = vmatpush1.bf16.msra.mxu0 0
        %716 = vmatprep.subr.bf16.mxu0 0
        %717 = vmatpush1.bf16.msra.mxu0 0
        %718 = vmatprep.subr.bf16.mxu0 0
        %719 = vmatpush1.bf16.msra.mxu0 0
        %720 = vmatprep.subr.bf16.mxu0 0
        %721 = vmatpush1.bf16.msra.mxu0 0
        %722 = vmatprep.mubr.bf16.mxu0 0
        %723 = vmatmul.mubr.bf16.gmra.mrb[0].mxu0 %v688
        %v724 = vpop.f32.mrb[0].mxu0
        %v725 = vadd.f32 %v668, %v724
        %v726 = vpop.f32.mrb[0].mxu0
        %v727 = vpop.f32.mrb[0].mxu0
        %v728 = vpop.f32.mrb[0].mxu0
        %729 = vdwg.mxu0
        %v734 = vunpack.c.l.b16 %v637
        %v735 = vunpack.c.l.b16 %v638
        %v736 = vunpack.c.l.b16 %v639
        %v737 = vunpack.c.l.b16 %v640
        %v738 = vpack.c.b16 %v735, %v734
        %v739 = vpack.c.b16 %v737, %v736
        %742 = vmatprep.subr.bf16.mxu0 0
        %743 = vmatpush1.bf16.msra.mxu0 %v738
        %744 = vmatprep.subr.bf16.mxu0 0
        %745 = vmatpush1.bf16.msra.mxu0 %v739
        %746 = vmatprep.subr.bf16.mxu0 0
        %747 = vmatpush1.bf16.msra.mxu0 0
        %748 = vmatprep.subr.bf16.mxu0 0
        %749 = vmatpush1.bf16.msra.mxu0 0
        %750 = vmatprep.subr.bf16.mxu0 0
        %751 = vmatpush1.bf16.msra.mxu0 0
        %752 = vmatprep.subr.bf16.mxu0 0
        %753 = vmatpush1.bf16.msra.mxu0 0
        %754 = vmatprep.subr.bf16.mxu0 0
        %755 = vmatpush1.bf16.msra.mxu0 0
        %756 = vmatprep.subr.bf16.mxu0 0
        %757 = vmatpush1.bf16.msra.mxu0 0
        %758 = vmatprep.subr.bf16.mxu0 0
        %759 = vmatpush1.bf16.msra.mxu0 0
        %760 = vmatprep.subr.bf16.mxu0 0
        %761 = vmatpush1.bf16.msra.mxu0 0
        %762 = vmatprep.subr.bf16.mxu0 0
        %763 = vmatpush1.bf16.msra.mxu0 0
        %764 = vmatprep.subr.bf16.mxu0 0
        %765 = vmatpush1.bf16.msra.mxu0 0
        %766 = vmatprep.subr.bf16.mxu0 0
        %767 = vmatpush1.bf16.msra.mxu0 0
        %768 = vmatprep.subr.bf16.mxu0 0
        %769 = vmatpush1.bf16.msra.mxu0 0
        %770 = vmatprep.subr.bf16.mxu0 0
        %771 = vmatpush1.bf16.msra.mxu0 0
        %772 = vmatprep.subr.bf16.mxu0 0
        %773 = vmatpush1.bf16.msra.mxu0 0
        %774 = vmatprep.mubr.bf16.mxu0 0
        %775 = vmatmul.mubr.bf16.gmra.mrb[0].mxu0 %v688
        %v776 = vpop.f32.mrb[0].mxu0
        %v777 = vadd.f32 %v672, %v776
        %v778 = vpop.f32.mrb[0].mxu0
        %v779 = vpop.f32.mrb[0].mxu0
        %v780 = vpop.f32.mrb[0].mxu0
        %781 = vdwg.mxu0
        %v784 = vlaneseq
        %v785 = vshrl.u32 %v784, 7
        %v786 = vsub.s32 0, %v785
        %v787 = vrot.slane %v659, %v786
        %v788 = vlaneseq
        %v789 = vshrl.u32 %v788, 7
        %v790 = vsub.s32 0, %v789
        %v791 = vrot.slane %v660, %v790
        %v798 = vunpack.c.l.b16 %v641
        %v799 = vunpack.c.l.b16 %v642
        %v800 = vunpack.c.l.b16 %v643
        %v801 = vunpack.c.l.b16 %v644
        %v802 = vpack.c.b16 %v799, %v798
        %v803 = vpack.c.b16 %v801, %v800
        %806 = vmatprep.subr.bf16.mxu0 0
        %807 = vmatpush1.bf16.msra.mxu0 %v802
        %808 = vmatprep.subr.bf16.mxu0 0
        %809 = vmatpush1.bf16.msra.mxu0 %v803
        %810 = vmatprep.subr.bf16.mxu0 0
        %811 = vmatpush1.bf16.msra.mxu0 0
        %812 = vmatprep.subr.bf16.mxu0 0
        %813 = vmatpush1.bf16.msra.mxu0 0
        %814 = vmatprep.subr.bf16.mxu0 0
        %815 = vmatpush1.bf16.msra.mxu0 0
        %816 = vmatprep.subr.bf16.mxu0 0
        %817 = vmatpush1.bf16.msra.mxu0 0
        %818 = vmatprep.subr.bf16.mxu0 0
        %819 = vmatpush1.bf16.msra.mxu0 0
        %820 = vmatprep.subr.bf16.mxu0 0
        %821 = vmatpush1.bf16.msra.mxu0 0
        %822 = vmatprep.subr.bf16.mxu0 0
        %823 = vmatpush1.bf16.msra.mxu0 0
        %824 = vmatprep.subr.bf16.mxu0 0
        %825 = vmatpush1.bf16.msra.mxu0 0
        %826 = vmatprep.subr.bf16.mxu0 0
        %827 = vmatpush1.bf16.msra.mxu0 0
        %828 = vmatprep.subr.bf16.mxu0 0
        %829 = vmatpush1.bf16.msra.mxu0 0
        %830 = vmatprep.subr.bf16.mxu0 0
        %831 = vmatpush1.bf16.msra.mxu0 0
        %832 = vmatprep.subr.bf16.mxu0 0
        %833 = vmatpush1.bf16.msra.mxu0 0
        %834 = vmatprep.subr.bf16.mxu0 0
        %835 = vmatpush1.bf16.msra.mxu0 0
        %836 = vmatprep.subr.bf16.mxu0 0
        %837 = vmatpush1.bf16.msra.mxu0 0
        %838 = vmatprep.mubr.bf16.mxu0 0
        %839 = vmatmul.mubr.bf16.gmra.mrb[0].mxu0 %v688
        %v840 = vpop.f32.mrb[0].mxu0
        %v841 = vadd.f32 %v787, %v840
        %v842 = vpop.f32.mrb[0].mxu0
        %v843 = vpop.f32.mrb[0].mxu0
        %v844 = vpop.f32.mrb[0].mxu0
        %845 = vdwg.mxu0
        %v850 = vunpack.c.l.b16 %v645
        %v851 = vunpack.c.l.b16 %v646
        %v852 = vunpack.c.l.b16 %v647
        %v853 = vunpack.c.l.b16 %v648
        %v854 = vpack.c.b16 %v851, %v850
        %v855 = vpack.c.b16 %v853, %v852
        %858 = vmatprep.subr.bf16.mxu0 0
        %859 = vmatpush1.bf16.msra.mxu0 %v854
        %860 = vmatprep.subr.bf16.mxu0 0
        %861 = vmatpush1.bf16.msra.mxu0 %v855
        %862 = vmatprep.subr.bf16.mxu0 0
        %863 = vmatpush1.bf16.msra.mxu0 0
        %864 = vmatprep.subr.bf16.mxu0 0
        %865 = vmatpush1.bf16.msra.mxu0 0
        %866 = vmatprep.subr.bf16.mxu0 0
        %867 = vmatpush1.bf16.msra.mxu0 0
        %868 = vmatprep.subr.bf16.mxu0 0
        %869 = vmatpush1.bf16.msra.mxu0 0
        %870 = vmatprep.subr.bf16.mxu0 0
        %871 = vmatpush1.bf16.msra.mxu0 0
        %872 = vmatprep.subr.bf16.mxu0 0
        %873 = vmatpush1.bf16.msra.mxu0 0
        %874 = vmatprep.subr.bf16.mxu0 0
        %875 = vmatpush1.bf16.msra.mxu0 0
        %876 = vmatprep.subr.bf16.mxu0 0
        %877 = vmatpush1.bf16.msra.mxu0 0
        %878 = vmatprep.subr.bf16.mxu0 0
        %879 = vmatpush1.bf16.msra.mxu0 0
        %880 = vmatprep.subr.bf16.mxu0 0
        %881 = vmatpush1.bf16.msra.mxu0 0
        %882 = vmatprep.subr.bf16.mxu0 0
        %883 = vmatpush1.bf16.msra.mxu0 0
        %884 = vmatprep.subr.bf16.mxu0 0
        %885 = vmatpush1.bf16.msra.mxu0 0
        %886 = vmatprep.subr.bf16.mxu0 0
        %887 = vmatpush1.bf16.msra.mxu0 0
        %888 = vmatprep.subr.bf16.mxu0 0
        %889 = vmatpush1.bf16.msra.mxu0 0
        %890 = vmatprep.mubr.bf16.mxu0 0
        %891 = vmatmul.mubr.bf16.gmra.mrb[0].mxu0 %v688
        %v892 = vpop.f32.mrb[0].mxu0
        %v893 = vadd.f32 %v791, %v892
        %v894 = vpop.f32.mrb[0].mxu0
        %v895 = vpop.f32.mrb[0].mxu0
        %v896 = vpop.f32.mrb[0].mxu0
        %897 = vdwg.mxu0
        %v900 = vlaneseq
        %v901 = vshrl.u32 %v900, 7
        %v902 = vsub.s32 0, %v901
        %v903 = vrot.slane %v661, %v902
        %v904 = vlaneseq
        %v905 = vshrl.u32 %v904, 7
        %v906 = vsub.s32 0, %v905
        %v907 = vrot.slane %v662, %v906
        %v914 = vunpack.c.l.b16 %v649
        %v915 = vunpack.c.l.b16 %v650
        %v916 = vunpack.c.l.b16 %v651
        %v917 = vunpack.c.l.b16 %v652
        %v918 = vpack.c.b16 %v915, %v914
        %v919 = vpack.c.b16 %v917, %v916
        %922 = vmatprep.subr.bf16.mxu0 0
        %923 = vmatpush1.bf16.msra.mxu0 %v918
        %924 = vmatprep.subr.bf16.mxu0 0
        %925 = vmatpush1.bf16.msra.mxu0 %v919
        %926 = vmatprep.subr.bf16.mxu0 0
        %927 = vmatpush1.bf16.msra.mxu0 0
        %928 = vmatprep.subr.bf16.mxu0 0
        %929 = vmatpush1.bf16.msra.mxu0 0
        %930 = vmatprep.subr.bf16.mxu0 0
        %931 = vmatpush1.bf16.msra.mxu0 0
        %932 = vmatprep.subr.bf16.mxu0 0
        %933 = vmatpush1.bf16.msra.mxu0 0
        %934 = vmatprep.subr.bf16.mxu0 0
        %935 = vmatpush1.bf16.msra.mxu0 0
        %936 = vmatprep.subr.bf16.mxu0 0
        %937 = vmatpush1.bf16.msra.mxu0 0
        %938 = vmatprep.subr.bf16.mxu0 0
        %939 = vmatpush1.bf16.msra.mxu0 0
        %940 = vmatprep.subr.bf16.mxu0 0
        %941 = vmatpush1.bf16.msra.mxu0 0
        %942 = vmatprep.subr.bf16.mxu0 0
        %943 = vmatpush1.bf16.msra.mxu0 0
        %944 = vmatprep.subr.bf16.mxu0 0
        %945 = vmatpush1.bf16.msra.mxu0 0
        %946 = vmatprep.subr.bf16.mxu0 0
        %947 = vmatpush1.bf16.msra.mxu0 0
        %948 = vmatprep.subr.bf16.mxu0 0
        %949 = vmatpush1.bf16.msra.mxu0 0
        %950 = vmatprep.subr.bf16.mxu0 0
        %951 = vmatpush1.bf16.msra.mxu0 0
        %952 = vmatprep.subr.bf16.mxu0 0
        %953 = vmatpush1.bf16.msra.mxu0 0
        %954 = vmatprep.mubr.bf16.mxu0 0
        %955 = vmatmul.mubr.bf16.gmra.mrb[0].mxu0 %v688
        %v956 = vpop.f32.mrb[0].mxu0
        %v957 = vadd.f32 %v903, %v956
        %v958 = vpop.f32.mrb[0].mxu0
        %v959 = vpop.f32.mrb[0].mxu0
        %v960 = vpop.f32.mrb[0].mxu0
        %961 = vdwg.mxu0
        %v966 = vunpack.c.l.b16 %v653
        %v967 = vunpack.c.l.b16 %v654
        %v968 = vunpack.c.l.b16 %v655
        %v969 = vunpack.c.l.b16 %v656
        %v970 = vpack.c.b16 %v967, %v966
        %v971 = vpack.c.b16 %v969, %v968
        %974 = vmatprep.subr.bf16.mxu0 0
        %975 = vmatpush1.bf16.msra.mxu0 %v970
        %976 = vmatprep.subr.bf16.mxu0 0
        %977 = vmatpush1.bf16.msra.mxu0 %v971
        %978 = vmatprep.subr.bf16.mxu0 0
        %979 = vmatpush1.bf16.msra.mxu0 0
        %980 = vmatprep.subr.bf16.mxu0 0
        %981 = vmatpush1.bf16.msra.mxu0 0
        %982 = vmatprep.subr.bf16.mxu0 0
        %983 = vmatpush1.bf16.msra.mxu0 0
        %984 = vmatprep.subr.bf16.mxu0 0
        %985 = vmatpush1.bf16.msra.mxu0 0
        %986 = vmatprep.subr.bf16.mxu0 0
        %987 = vmatpush1.bf16.msra.mxu0 0
        %988 = vmatprep.subr.bf16.mxu0 0
        %989 = vmatpush1.bf16.msra.mxu0 0
        %990 = vmatprep.subr.bf16.mxu0 0
        %991 = vmatpush1.bf16.msra.mxu0 0
        %992 = vmatprep.subr.bf16.mxu0 0
        %993 = vmatpush1.bf16.msra.mxu0 0
        %994 = vmatprep.subr.bf16.mxu0 0
        %995 = vmatpush1.bf16.msra.mxu0 0
        %996 = vmatprep.subr.bf16.mxu0 0
        %997 = vmatpush1.bf16.msra.mxu0 0
        %998 = vmatprep.subr.bf16.mxu0 0
        %999 = vmatpush1.bf16.msra.mxu0 0
        %1000 = vmatprep.subr.bf16.mxu0 0
        %1001 = vmatpush1.bf16.msra.mxu0 0
        %1002 = vmatprep.subr.bf16.mxu0 0
        %1003 = vmatpush1.bf16.msra.mxu0 0
        %1004 = vmatprep.subr.bf16.mxu0 0
        %1005 = vmatpush1.bf16.msra.mxu0 0
        %1006 = vmatprep.mubr.bf16.mxu0 0
        %1007 = vmatmul.mubr.bf16.gmra.mrb[0].mxu0 %v688
        %v1008 = vpop.f32.mrb[0].mxu0
        %v1009 = vadd.f32 %v907, %v1008
        %v1010 = vpop.f32.mrb[0].mxu0
        %v1011 = vpop.f32.mrb[0].mxu0
        %v1012 = vpop.f32.mrb[0].mxu0
        %1013 = vdwg.mxu0
        %v1014 = vpack.c.bf16 %v725, %v725
        %v1015 = vpack.c.bf16 %v777, %v777
        %v1016 = vpack.c.bf16 %v841, %v841
        %v1017 = vpack.c.bf16 %v893, %v893
        %vm1018 = vcmask 130048
        %v1020 = vsel %vm1018, %v1014, 0
        %v1023 = vsel %vm1018, %v1016, 0
        %1025 = vmatprep.subr.bf16.mxu0 0
        %1026 = vmatpush1.bf16.xpose.msra.mxu0 %v1023
        %1027 = vmatprep.subr.bf16.mxu0 0
        %1028 = vmatpush1.bf16.xpose.msra.mxu0 0
        %1029 = vmatprep.subr.bf16.mxu0 0
        %1030 = vmatpush1.bf16.xpose.msra.mxu0 0
        %1031 = vmatprep.subr.bf16.mxu0 0
        %1032 = vmatpush1.bf16.xpose.msra.mxu0 0
        %1033 = vmatprep.subr.bf16.mxu0 0
        %1034 = vmatpush1.bf16.xpose.msra.mxu0 0
        %1035 = vmatprep.subr.bf16.mxu0 0
        %1036 = vmatpush1.bf16.xpose.msra.mxu0 0
        %1037 = vmatprep.subr.bf16.mxu0 0
        %1038 = vmatpush1.bf16.xpose.msra.mxu0 0
        %1039 = vmatprep.subr.bf16.mxu0 0
        %1040 = vmatpush1.bf16.xpose.msra.mxu0 0
        %1041 = vmatprep.subr.bf16.mxu0 0
        %1042 = vmatpush1.bf16.xpose.msra.mxu0 0
        %1043 = vmatprep.subr.bf16.mxu0 0
        %1044 = vmatpush1.bf16.xpose.msra.mxu0 0
        %1045 = vmatprep.subr.bf16.mxu0 0
        %1046 = vmatpush1.bf16.xpose.msra.mxu0 0
        %1047 = vmatprep.subr.bf16.mxu0 0
        %1048 = vmatpush1.bf16.xpose.msra.mxu0 0
        %1049 = vmatprep.subr.bf16.mxu0 0
        %1050 = vmatpush1.bf16.xpose.msra.mxu0 0
        %1051 = vmatprep.subr.bf16.mxu0 0
        %1052 = vmatpush1.bf16.xpose.msra.mxu0 0
        %1053 = vmatprep.subr.bf16.mxu0 0
        %1054 = vmatpush1.bf16.xpose.msra.mxu0 0
        %1055 = vmatprep.subr.bf16.mxu0 0
        %1056 = vmatpush1.bf16.xpose.msra.mxu0 0
        %1057 = vmatprep.mubr.bf16.mxu0 0
        %1058 = vmatmul.mubr.bf16.gmra.mrb[0].mxu0 %v1020
        %v1059 = vpop.f32.mrb[0].mxu0
        %v1060 = vadd.f32 %v605, %v1059
        %v1061 = vpop.f32.mrb[0].mxu0
        %v1062 = vpop.f32.mrb[0].mxu0
        %v1063 = vpop.f32.mrb[0].mxu0
        %1064 = vdwg.mxu0
        %v1066 = vsel %vm1018, %v1015, 0
        %v1069 = vsel %vm1018, %v1017, 0
        %1071 = vmatprep.subr.bf16.mxu0 0
        %1072 = vmatpush1.bf16.xpose.msra.mxu0 %v1069
        %1073 = vmatprep.subr.bf16.mxu0 0
        %1074 = vmatpush1.bf16.xpose.msra.mxu0 0
        %1075 = vmatprep.subr.bf16.mxu0 0
        %1076 = vmatpush1.bf16.xpose.msra.mxu0 0
        %1077 = vmatprep.subr.bf16.mxu0 0
        %1078 = vmatpush1.bf16.xpose.msra.mxu0 0
        %1079 = vmatprep.subr.bf16.mxu0 0
        %1080 = vmatpush1.bf16.xpose.msra.mxu0 0
        %1081 = vmatprep.subr.bf16.mxu0 0
        %1082 = vmatpush1.bf16.xpose.msra.mxu0 0
        %1083 = vmatprep.subr.bf16.mxu0 0
        %1084 = vmatpush1.bf16.xpose.msra.mxu0 0
        %1085 = vmatprep.subr.bf16.mxu0 0
        %1086 = vmatpush1.bf16.xpose.msra.mxu0 0
        %1087 = vmatprep.subr.bf16.mxu0 0
        %1088 = vmatpush1.bf16.xpose.msra.mxu0 0
        %1089 = vmatprep.subr.bf16.mxu0 0
        %1090 = vmatpush1.bf16.xpose.msra.mxu0 0
        %1091 = vmatprep.subr.bf16.mxu0 0
        %1092 = vmatpush1.bf16.xpose.msra.mxu0 0
        %1093 = vmatprep.subr.bf16.mxu0 0
        %1094 = vmatpush1.bf16.xpose.msra.mxu0 0
        %1095 = vmatprep.subr.bf16.mxu0 0
        %1096 = vmatpush1.bf16.xpose.msra.mxu0 0
        %1097 = vmatprep.subr.bf16.mxu0 0
        %1098 = vmatpush1.bf16.xpose.msra.mxu0 0
        %1099 = vmatprep.subr.bf16.mxu0 0
        %1100 = vmatpush1.bf16.xpose.msra.mxu0 0
        %1101 = vmatprep.subr.bf16.mxu0 0
        %1102 = vmatpush1.bf16.xpose.msra.mxu0 0
        %1103 = vmatprep.mubr.bf16.mxu0 0
        %1104 = vmatmul.mubr.bf16.gmra.mrb[0].mxu0 %v1066
        %v1105 = vpop.f32.mrb[0].mxu0
        %v1106 = vadd.f32 %v605, %v1105
        %v1107 = vpop.f32.mrb[0].mxu0
        %v1108 = vpop.f32.mrb[0].mxu0
        %v1109 = vpop.f32.mrb[0].mxu0
        %1110 = vdwg.mxu0
        %vm1111 = vcmask 64512
        %v1112 = vsel %vm1111, %v1060, -inf
        %1113 = vmax.xlane.f32.xlu0 %v1112
        %v1114 = vpop.xlane.xlu0 %1113
        %v1115 = vsel %vm1111, %v1106, -inf
        %1116 = vmax.xlane.f32.xlu0 %v1115
        %v1117 = vpop.xlane.xlu0 %1116
        %v1118 = vsub.f32 %v1060, %v1114
        %v1119 = vsub.f32 %v1106, %v1117
        %v1120 = vmul.f32 %v1118, 1.442695
        %v1121 = vpow.pop %v1120
        %v1122 = vmul.f32 %v1119, 1.442695
        %v1123 = vpow.pop %v1122
        %v1124 = vsel %vm1111, %v1121, 0.0
        %1125 = vadd.xlane.f32.xlu0 %v1124
        %v1126 = vpop.xlane.xlu0 %1125
        %v1127 = vsel %vm1111, %v1123, 0.0
        %1128 = vadd.xlane.f32.xlu0 %v1127
        %v1129 = vpop.xlane.xlu0 %1128
        %v1130 = vrcp.pop %v1126
        %v1131 = vrcp.pop %v1129
        %v1132 = vmul.f32 %v1121, %v1130
        %v1133 = vmul.f32 %v1123, %v1131
        %v1134 = vpack.c.bf16 %v1132, %v1132
        %v1135 = vpack.c.bf16 %v1133, %v1133
        %v1136 = vpack.c.bf16 %v957, %v957
        %v1137 = vpack.c.bf16 %v1009, %v1009
        %v1139 = vsel %vm1111, %v1134, 0
        %vm1141 = vcmask 1043456
        %v1143 = vsel %vm1141, %v1136, 0
        %1145 = vmatprep.subr.bf16.mxu0 0
        %1146 = vmatpush1.bf16.msra.mxu0 %v1143
        %1147 = vmatprep.subr.bf16.mxu0 0
        %1148 = vmatpush1.bf16.msra.mxu0 0
        %1149 = vmatprep.subr.bf16.mxu0 0
        %1150 = vmatpush1.bf16.msra.mxu0 0
        %1151 = vmatprep.subr.bf16.mxu0 0
        %1152 = vmatpush1.bf16.msra.mxu0 0
        %1153 = vmatprep.subr.bf16.mxu0 0
        %1154 = vmatpush1.bf16.msra.mxu0 0
        %1155 = vmatprep.subr.bf16.mxu0 0
        %1156 = vmatpush1.bf16.msra.mxu0 0
        %1157 = vmatprep.subr.bf16.mxu0 0
        %1158 = vmatpush1.bf16.msra.mxu0 0
        %1159 = vmatprep.subr.bf16.mxu0 0
        %1160 = vmatpush1.bf16.msra.mxu0 0
        %1161 = vmatprep.subr.bf16.mxu0 0
        %1162 = vmatpush1.bf16.msra.mxu0 0
        %1163 = vmatprep.subr.bf16.mxu0 0
        %1164 = vmatpush1.bf16.msra.mxu0 0
        %1165 = vmatprep.subr.bf16.mxu0 0
        %1166 = vmatpush1.bf16.msra.mxu0 0
        %1167 = vmatprep.subr.bf16.mxu0 0
        %1168 = vmatpush1.bf16.msra.mxu0 0
        %1169 = vmatprep.subr.bf16.mxu0 0
        %1170 = vmatpush1.bf16.msra.mxu0 0
        %1171 = vmatprep.subr.bf16.mxu0 0
        %1172 = vmatpush1.bf16.msra.mxu0 0
        %1173 = vmatprep.subr.bf16.mxu0 0
        %1174 = vmatpush1.bf16.msra.mxu0 0
        %1175 = vmatprep.subr.bf16.mxu0 0
        %1176 = vmatpush1.bf16.msra.mxu0 0
        %1177 = vmatprep.mubr.bf16.mxu0 0
        %1178 = vmatmul.mubr.bf16.gmra.mrb[0].mxu0 %v1139
        %v1179 = vpop.f32.mrb[0].mxu0
        %v1180 = vadd.f32 0.0, %v1179
        %v1181 = vpop.f32.mrb[0].mxu0
        %v1182 = vpop.f32.mrb[0].mxu0
        %v1183 = vpop.f32.mrb[0].mxu0
        %1184 = vdwg.mxu0
        %v1186 = vsel %vm1111, %v1135, 0
        %v1189 = vsel %vm1141, %v1137, 0
        %1191 = vmatprep.subr.bf16.mxu0 0
        %1192 = vmatpush1.bf16.msra.mxu0 %v1189
        %1193 = vmatprep.subr.bf16.mxu0 0
        %1194 = vmatpush1.bf16.msra.mxu0 0
        %1195 = vmatprep.subr.bf16.mxu0 0
        %1196 = vmatpush1.bf16.msra.mxu0 0
        %1197 = vmatprep.subr.bf16.mxu0 0
        %1198 = vmatpush1.bf16.msra.mxu0 0
        %1199 = vmatprep.subr.bf16.mxu0 0
        %1200 = vmatpush1.bf16.msra.mxu0 0
        %1201 = vmatprep.subr.bf16.mxu0 0
        %1202 = vmatpush1.bf16.msra.mxu0 0
        %1203 = vmatprep.subr.bf16.mxu0 0
        %1204 = vmatpush1.bf16.msra.mxu0 0
        %1205 = vmatprep.subr.bf16.mxu0 0
        %1206 = vmatpush1.bf16.msra.mxu0 0
        %1207 = vmatprep.subr.bf16.mxu0 0
        %1208 = vmatpush1.bf16.msra.mxu0 0
        %1209 = vmatprep.subr.bf16.mxu0 0
        %1210 = vmatpush1.bf16.msra.mxu0 0
        %1211 = vmatprep.subr.bf16.mxu0 0
        %1212 = vmatpush1.bf16.msra.mxu0 0
        %1213 = vmatprep.subr.bf16.mxu0 0
        %1214 = vmatpush1.bf16.msra.mxu0 0
        %1215 = vmatprep.subr.bf16.mxu0 0
        %1216 = vmatpush1.bf16.msra.mxu0 0
        %1217 = vmatprep.subr.bf16.mxu0 0
        %1218 = vmatpush1.bf16.msra.mxu0 0
        %1219 = vmatprep.subr.bf16.mxu0 0
        %1220 = vmatpush1.bf16.msra.mxu0 0
        %1221 = vmatprep.subr.bf16.mxu0 0
        %1222 = vmatpush1.bf16.msra.mxu0 0
        %1223 = vmatprep.mubr.bf16.mxu0 0
        %1224 = vmatmul.mubr.bf16.gmra.mrb[0].mxu0 %v1186
        %v1225 = vpop.f32.mrb[0].mxu0
        %v1226 = vadd.f32 0.0, %v1225
        %v1227 = vpop.f32.mrb[0].mxu0
        %v1228 = vpop.f32.mrb[0].mxu0
        %v1229 = vpop.f32.mrb[0].mxu0
        %1230 = vdwg.mxu0
        %v1231 = vpack.c.bf16 %v1180, %v1180
        %v1232 = vpack.c.bf16 %v1226, %v1226
        %v1233 = vld [vmem:[%s561] sm:$0xf]
        %v1234 = vld [vmem:[%s561 + $0x4] sm:$0xf]
        %v1235 = vld [vmem:[%s561 + $0x8] sm:$0xf]
        %v1236 = vld [vmem:[%s561 + $0xc] sm:$0xf]
        %v1239 = vunpack.c.l.b16 %v1233
        %v1240 = vunpack.c.l.b16 %v1234
        %v1241 = vpack.c.b16 %v1240, %v1239
        %v1244 = vsel %vm1018, %v1231, 0
        %1246 = vmatprep.subr.bf16.mxu0 0
        %1247 = vmatpush1.bf16.msra.mxu0 %v1241
        %1248 = vmatprep.subr.bf16.mxu0 0
        %1249 = vmatpush1.bf16.msra.mxu0 0
        %1250 = vmatprep.subr.bf16.mxu0 0
        %1251 = vmatpush1.bf16.msra.mxu0 0
        %1252 = vmatprep.subr.bf16.mxu0 0
        %1253 = vmatpush1.bf16.msra.mxu0 0
        %1254 = vmatprep.subr.bf16.mxu0 0
        %1255 = vmatpush1.bf16.msra.mxu0 0
        %1256 = vmatprep.subr.bf16.mxu0 0
        %1257 = vmatpush1.bf16.msra.mxu0 0
        %1258 = vmatprep.subr.bf16.mxu0 0
        %1259 = vmatpush1.bf16.msra.mxu0 0
        %1260 = vmatprep.subr.bf16.mxu0 0
        %1261 = vmatpush1.bf16.msra.mxu0 0
        %1262 = vmatprep.subr.bf16.mxu0 0
        %1263 = vmatpush1.bf16.msra.mxu0 0
        %1264 = vmatprep.subr.bf16.mxu0 0
        %1265 = vmatpush1.bf16.msra.mxu0 0
        %1266 = vmatprep.subr.bf16.mxu0 0
        %1267 = vmatpush1.bf16.msra.mxu0 0
        %1268 = vmatprep.subr.bf16.mxu0 0
        %1269 = vmatpush1.bf16.msra.mxu0 0
        %1270 = vmatprep.subr.bf16.mxu0 0
        %1271 = vmatpush1.bf16.msra.mxu0 0
        %1272 = vmatprep.subr.bf16.mxu0 0
        %1273 = vmatpush1.bf16.msra.mxu0 0
        %1274 = vmatprep.subr.bf16.mxu0 0
        %1275 = vmatpush1.bf16.msra.mxu0 0
        %1276 = vmatprep.subr.bf16.mxu0 0
        %1277 = vmatpush1.bf16.msra.mxu0 0
        %1278 = vmatprep.mubr.bf16.mxu0 0
        %1279 = vmatmul.mubr.bf16.gmra.mrb[0].mxu0 %v1244
        %v1280 = vpop.f32.mrb[0].mxu0
        %v1281 = vadd.f32 0.0, %v1280
        %v1282 = vpop.f32.mrb[0].mxu0
        %v1283 = vpop.f32.mrb[0].mxu0
        %v1284 = vpop.f32.mrb[0].mxu0
        %1285 = vdwg.mxu0
        %v1288 = vunpack.c.l.b16 %v1235
        %v1289 = vunpack.c.l.b16 %v1236
        %v1290 = vpack.c.b16 %v1289, %v1288
        %v1293 = vsel %vm1018, %v1232, 0
        %1295 = vmatprep.subr.bf16.mxu0 0
        %1296 = vmatpush1.bf16.msra.mxu0 %v1290
        %1297 = vmatprep.subr.bf16.mxu0 0
        %1298 = vmatpush1.bf16.msra.mxu0 0
        %1299 = vmatprep.subr.bf16.mxu0 0
        %1300 = vmatpush1.bf16.msra.mxu0 0
        %1301 = vmatprep.subr.bf16.mxu0 0
        %1302 = vmatpush1.bf16.msra.mxu0 0
        %1303 = vmatprep.subr.bf16.mxu0 0
        %1304 = vmatpush1.bf16.msra.mxu0 0
        %1305 = vmatprep.subr.bf16.mxu0 0
        %1306 = vmatpush1.bf16.msra.mxu0 0
        %1307 = vmatprep.subr.bf16.mxu0 0
        %1308 = vmatpush1.bf16.msra.mxu0 0
        %1309 = vmatprep.subr.bf16.mxu0 0
        %1310 = vmatpush1.bf16.msra.mxu0 0
        %1311 = vmatprep.subr.bf16.mxu0 0
        %1312 = vmatpush1.bf16.msra.mxu0 0
        %1313 = vmatprep.subr.bf16.mxu0 0
        %1314 = vmatpush1.bf16.msra.mxu0 0
        %1315 = vmatprep.subr.bf16.mxu0 0
        %1316 = vmatpush1.bf16.msra.mxu0 0
        %1317 = vmatprep.subr.bf16.mxu0 0
        %1318 = vmatpush1.bf16.msra.mxu0 0
        %1319 = vmatprep.subr.bf16.mxu0 0
        %1320 = vmatpush1.bf16.msra.mxu0 0
        %1321 = vmatprep.subr.bf16.mxu0 0
        %1322 = vmatpush1.bf16.msra.mxu0 0
        %1323 = vmatprep.subr.bf16.mxu0 0
        %1324 = vmatpush1.bf16.msra.mxu0 0
        %1325 = vmatprep.subr.bf16.mxu0 0
        %1326 = vmatpush1.bf16.msra.mxu0 0
        %1327 = vmatprep.mubr.bf16.mxu0 0
        %1328 = vmatmul.mubr.bf16.gmra.mrb[0].mxu0 %v1293
        %v1329 = vpop.f32.mrb[0].mxu0
        %v1330 = vadd.f32 0.0, %v1329
        %v1331 = vpop.f32.mrb[0].mxu0
        %v1332 = vpop.f32.mrb[0].mxu0
        %v1333 = vpop.f32.mrb[0].mxu0
        %1334 = vdwg.mxu0
        %v1335 = vsel %vm607, %v1281, 0.0
        %v1336 = vsel %vm607, %v1330, 0.0
        %v1337 = vadd.f32 %v1335, %v1336
        %v1338 = vadd.f32 %v604, %v1337
        %v1339 = vlaneseq
        %v1340 = vshrl.u32 %v1339, 7
        %v1341 = vsub.s32 2, %v1340
        %v1342 = vrot.slane %v606, %v1341
        %v1343 = vadd.f32 %v1338, %v1342
        %v1344 = vsel %vm607, %v1343, 0.0
        %1345 = vadd.xlane.f32.xlu0 %v1344
        %v1346 = vpop.xlane.xlu0 %1345
        %v1347 = vmul.f32 %v1346, %v611
        %v1348 = vsub.f32 %v1343, %v1347
        %v1349 = vmul.f32 %v1348, %v1348
        %v1350 = vsel %vm607, %v1349, 0.0
        %1351 = vadd.xlane.f32.xlu0 %v1350
        %v1352 = vpop.xlane.xlu0 %1351
        %v1353 = vmul.f32 %v1352, %v611
        %v1354 = vadd.f32 %v1353, 1e-05
        %v1355 = vrsqrt.pop %v1354
        %v1356 = vmul.f32 %v1348, %v1355
        %v1357 = vlaneseq
        %v1358 = vshrl.u32 %v1357, 7
        %v1359 = vsub.s32 3, %v1358
        %v1360 = vrot.slane %v606, %v1359
        %v1361 = vmul.f32 %v1356, %v1360
        %v1362 = vlaneseq
        %v1363 = vshrl.u32 %v1362, 7
        %v1364 = vsub.s32 4, %v1363
        %v1365 = vrot.slane %v606, %v1364
        %v1366 = vadd.f32 %v1361, %v1365
        %v1367 = vpack.c.bf16 %v1366, %v1366
        %v1368 = vld [vmem:[%s566] sm:$0xf]
        %v1369 = vld [vmem:[%s566 + $0x4] sm:$0xf]
        %v1370 = vld [vmem:[%s566 + $0x8] sm:$0xf]
        %v1371 = vld [vmem:[%s566 + $0xc] sm:$0xf]
        %v1372 = vld [vmem:[%s569] sm:$0x1]
        %v1374 = vlaneseq
        %v1375 = vshrl.u32 %v1374, 7
        %v1376 = vsub.s32 0, %v1375
        %v1377 = vrot.slane %v1372, %v1376
        %v1383 = vunpack.c.l.b16 %v1368
        %v1384 = vunpack.c.l.b16 %v1369
        %v1385 = vunpack.c.l.b16 %v1370
        %v1386 = vunpack.c.l.b16 %v1371
        %v1387 = vpack.c.b16 %v1384, %v1383
        %v1388 = vpack.c.b16 %v1386, %v1385
        %v1392 = vsel %vm607, %v1367, 0
        %1394 = vmatprep.subr.bf16.mxu0 0
        %1395 = vmatpush1.bf16.msra.mxu0 %v1387
        %1396 = vmatprep.subr.bf16.mxu0 0
        %1397 = vmatpush1.bf16.msra.mxu0 %v1388
        %1398 = vmatprep.subr.bf16.mxu0 0
        %1399 = vmatpush1.bf16.msra.mxu0 0
        %1400 = vmatprep.subr.bf16.mxu0 0
        %1401 = vmatpush1.bf16.msra.mxu0 0
        %1402 = vmatprep.subr.bf16.mxu0 0
        %1403 = vmatpush1.bf16.msra.mxu0 0
        %1404 = vmatprep.subr.bf16.mxu0 0
        %1405 = vmatpush1.bf16.msra.mxu0 0
        %1406 = vmatprep.subr.bf16.mxu0 0
        %1407 = vmatpush1.bf16.msra.mxu0 0
        %1408 = vmatprep.subr.bf16.mxu0 0
        %1409 = vmatpush1.bf16.msra.mxu0 0
        %1410 = vmatprep.subr.bf16.mxu0 0
        %1411 = vmatpush1.bf16.msra.mxu0 0
        %1412 = vmatprep.subr.bf16.mxu0 0
        %1413 = vmatpush1.bf16.msra.mxu0 0
        %1414 = vmatprep.subr.bf16.mxu0 0
        %1415 = vmatpush1.bf16.msra.mxu0 0
        %1416 = vmatprep.subr.bf16.mxu0 0
        %1417 = vmatpush1.bf16.msra.mxu0 0
        %1418 = vmatprep.subr.bf16.mxu0 0
        %1419 = vmatpush1.bf16.msra.mxu0 0
        %1420 = vmatprep.subr.bf16.mxu0 0
        %1421 = vmatpush1.bf16.msra.mxu0 0
        %1422 = vmatprep.subr.bf16.mxu0 0
        %1423 = vmatpush1.bf16.msra.mxu0 0
        %1424 = vmatprep.subr.bf16.mxu0 0
        %1425 = vmatpush1.bf16.msra.mxu0 0
        %1426 = vmatprep.mubr.bf16.mxu0 0
        %1427 = vmatmul.mubr.bf16.gmra.mrb[0].mxu0 %v1392
        %v1428 = vpop.f32.mrb[0].mxu0
        %v1429 = vadd.f32 %v1377, %v1428
        %v1430 = vpop.f32.mrb[0].mxu0
        %v1431 = vpop.f32.mrb[0].mxu0
        %v1432 = vpop.f32.mrb[0].mxu0
        %1433 = vdwg.mxu0
        %v1434 = vmul.f32 %v1429, 1.702
        %v1435 = vxor.u32 %v1434, 2147483648
        %v1436 = vmul.f32 %v1435, 1.442695
        %v1437 = vpow.pop %v1436
        %v1438 = vadd.f32 %v1437, 1.0
        %v1439 = vrcp.pop %v1438
        %v1440 = vmul.f32 1.0, %v1439
        %v1441 = vmul.f32 %v1429, %v1440
        %v1442 = vpack.c.bf16 %v1441, %v1441
        %v1443 = vld [vmem:[%s574] sm:$0xf]
        %v1444 = vld [vmem:[%s574 + $0x4] sm:$0xf]
        %v1445 = vld [vmem:[%s574 + $0x8] sm:$0xf]
        %v1446 = vld [vmem:[%s574 + $0xc] sm:$0xf]
        %v1447 = vld [vmem:[%s574 + $0x10] sm:$0xf]
        %v1448 = vld [vmem:[%s574 + $0x14] sm:$0xf]
        %v1449 = vld [vmem:[%s574 + $0x18] sm:$0xf]
        %v1450 = vld [vmem:[%s574 + $0x1c] sm:$0xf]
        %v1451 = vld [vmem:[%s574 + $0x20] sm:$0xf]
        %v1452 = vld [vmem:[%s574 + $0x24] sm:$0xf]
        %v1453 = vld [vmem:[%s574 + $0x28] sm:$0xf]
        %v1454 = vld [vmem:[%s574 + $0x2c] sm:$0xf]
        %v1455 = vld [vmem:[%s574 + $0x30] sm:$0xf]
        %v1456 = vld [vmem:[%s574 + $0x34] sm:$0xf]
        %v1457 = vld [vmem:[%s574 + $0x38] sm:$0xf]
        %v1458 = vld [vmem:[%s574 + $0x3c] sm:$0xf]
        %v1475 = vunpack.c.l.b16 %v1443
        %v1476 = vunpack.c.l.b16 %v1444
        %v1477 = vunpack.c.l.b16 %v1445
        %v1478 = vunpack.c.l.b16 %v1446
        %v1479 = vunpack.c.l.b16 %v1447
        %v1480 = vunpack.c.l.b16 %v1448
        %v1481 = vunpack.c.l.b16 %v1449
        %v1482 = vunpack.c.l.b16 %v1450
        %v1483 = vunpack.c.l.b16 %v1451
        %v1484 = vunpack.c.l.b16 %v1452
        %v1485 = vunpack.c.l.b16 %v1453
        %v1486 = vunpack.c.l.b16 %v1454
        %v1487 = vunpack.c.l.b16 %v1455
        %v1488 = vunpack.c.l.b16 %v1456
        %v1489 = vunpack.c.l.b16 %v1457
        %v1490 = vunpack.c.l.b16 %v1458
        %v1491 = vpack.c.b16 %v1476, %v1475
        %v1492 = vpack.c.b16 %v1478, %v1477
        %v1493 = vpack.c.b16 %v1480, %v1479
        %v1494 = vpack.c.b16 %v1482, %v1481
        %v1495 = vpack.c.b16 %v1484, %v1483
        %v1496 = vpack.c.b16 %v1486, %v1485
        %v1497 = vpack.c.b16 %v1488, %v1487
        %v1498 = vpack.c.b16 %v1490, %v1489
        %1507 = vmatprep.subr.bf16.mxu0 0
        %1508 = vmatpush1.bf16.msra.mxu0 %v1491
        %1509 = vmatprep.subr.bf16.mxu0 0
        %1510 = vmatpush1.bf16.msra.mxu0 %v1492
        %1511 = vmatprep.subr.bf16.mxu0 0
        %1512 = vmatpush1.bf16.msra.mxu0 %v1493
        %1513 = vmatprep.subr.bf16.mxu0 0
        %1514 = vmatpush1.bf16.msra.mxu0 %v1494
        %1515 = vmatprep.subr.bf16.mxu0 0
        %1516 = vmatpush1.bf16.msra.mxu0 %v1495
        %1517 = vmatprep.subr.bf16.mxu0 0
        %1518 = vmatpush1.bf16.msra.mxu0 %v1496
        %1519 = vmatprep.subr.bf16.mxu0 0
        %1520 = vmatpush1.bf16.msra.mxu0 %v1497
        %1521 = vmatprep.subr.bf16.mxu0 0
        %1522 = vmatpush1.bf16.msra.mxu0 %v1498
        %1523 = vmatprep.subr.bf16.mxu0 0
        %1524 = vmatpush1.bf16.msra.mxu0 0
        %1525 = vmatprep.subr.bf16.mxu0 0
        %1526 = vmatpush1.bf16.msra.mxu0 0
        %1527 = vmatprep.subr.bf16.mxu0 0
        %1528 = vmatpush1.bf16.msra.mxu0 0
        %1529 = vmatprep.subr.bf16.mxu0 0
        %1530 = vmatpush1.bf16.msra.mxu0 0
        %1531 = vmatprep.subr.bf16.mxu0 0
        %1532 = vmatpush1.bf16.msra.mxu0 0
        %1533 = vmatprep.subr.bf16.mxu0 0
        %1534 = vmatpush1.bf16.msra.mxu0 0
        %1535 = vmatprep.subr.bf16.mxu0 0
        %1536 = vmatpush1.bf16.msra.mxu0 0
        %1537 = vmatprep.subr.bf16.mxu0 0
        %1538 = vmatpush1.bf16.msra.mxu0 0
        %1539 = vmatprep.mubr.bf16.mxu0 0
        %1540 = vmatmul.mubr.bf16.gmra.mrb[0].mxu0 %v1442
        %v1541 = vpop.f32.mrb[0].mxu0
        %v1542 = vadd.f32 0.0, %v1541
        %v1543 = vpop.f32.mrb[0].mxu0
        %v1544 = vpop.f32.mrb[0].mxu0
        %v1545 = vpop.f32.mrb[0].mxu0
        %1546 = vdwg.mxu0
        %v1547 = vadd.f32 %v1343, %v1542
        %v1548 = vlaneseq
        %v1549 = vshrl.u32 %v1548, 7
        %v1550 = vsub.s32 5, %v1549
        %v1551 = vrot.slane %v606, %v1550
        %v1552 = vadd.f32 %v1547, %v1551
        %1553 = vst.msk [vmem:[#allocation2] sm:$0xff] %vm607, %v1552
        %p1554 = scmp.eq.s32.totalorder %s31, 1
        // Predicated region
        $region73: #{text_encoder_forward.1} parent=67 // pred_check
          %p1555 = pneg %p1554
        $region74: #{text_encoder_forward.1} parent=67 // pred_check_branch
          %1557 = sbr.rel (%p1555) target = $region76
        $region75: #{text_encoder_forward.1} parent=67 // pred_region
          %v1558 = vld [vmem:[%s547] sm:$0xff]
          %1560 = vset.pattern.permute.xlu0 0
          %1561 = vperm.xlu0 %1560, %v1558
          %v1562 = vpop.permute.xlu0 %1561
          %v1564 = vmul.f32 %v1552, %v1562
          %v1565 = vsel %vm607, %v1564, 0.0
          %v1566 = vrot.slane %v1565, 4
          %v1567 = vadd.f32 %v1565, %v1566
          %v1568 = vrot.slane %v1567, 2
          %v1569 = vadd.f32 %v1567, %v1568
          %v1570 = vrot.slane %v1569, 1
          %v1571 = vadd.f32 %v1569, %v1570
          %v1572 = vld [vmem:[%s10] sm:$0x3]
          %v1573 = vsel %vm607, %v1571, 0.0
          %1574 = vadd.xlane.f32.xlu0 %v1573
          %v1575 = vpop.xlane.xlu0 %1574
          %v1576 = vmul.f32 %v1575, %v611
          %v1577 = vsub.f32 %v1571, %v1576
          %v1578 = vmul.f32 %v1577, %v1577
          %v1579 = vsel %vm607, %v1578, 0.0
          %1580 = vadd.xlane.f32.xlu0 %v1579
          %v1581 = vpop.xlane.xlu0 %1580
          %v1582 = vmul.f32 %v1581, %v611
          %v1583 = vadd.f32 %v1582, 1e-05
          %v1584 = vrsqrt.pop %v1583
          %v1585 = vmul.f32 %v1577, %v1584
          %v1586 = vmul.f32 %v1585, %v1572
          %v1588 = vrot.slane %v1572, 1
          %v1590 = vadd.f32 %v1586, %v1588
          %v1591 = vpack.c.bf16 %v1590, %v1590
          %v1592 = vld [vmem:[%s11] sm:$0xf]
          %v1593 = vld [vmem:[%s11 + $0x4] sm:$0xf]
          %v1594 = vld [vmem:[%s11 + $0x8] sm:$0xf]
          %v1595 = vld [vmem:[%s11 + $0xc] sm:$0xf]
          %v1600 = vunpack.c.l.b16 %v1592
          %v1601 = vunpack.c.l.b16 %v1593
          %v1602 = vunpack.c.l.b16 %v1594
          %v1603 = vunpack.c.l.b16 %v1595
          %v1604 = vpack.c.b16 %v1601, %v1600
          %v1605 = vpack.c.b16 %v1603, %v1602
          %v1609 = vsel %vm607, %v1591, 0
          %1611 = vmatprep.subr.bf16.mxu0 0
          %1612 = vmatpush1.bf16.msra.mxu0 %v1604
          %1613 = vmatprep.subr.bf16.mxu0 0
          %1614 = vmatpush1.bf16.msra.mxu0 %v1605
          %1615 = vmatprep.subr.bf16.mxu0 0
          %1616 = vmatpush1.bf16.msra.mxu0 0
          %1617 = vmatprep.subr.bf16.mxu0 0
          %1618 = vmatpush1.bf16.msra.mxu0 0
          %1619 = vmatprep.subr.bf16.mxu0 0
          %1620 = vmatpush1.bf16.msra.mxu0 0
          %1621 = vmatprep.subr.bf16.mxu0 0
          %1622 = vmatpush1.bf16.msra.mxu0 0
          %1623 = vmatprep.subr.bf16.mxu0 0
          %1624 = vmatpush1.bf16.msra.mxu0 0
          %1625 = vmatprep.subr.bf16.mxu0 0
          %1626 = vmatpush1.bf16.msra.mxu0 0
          %1627 = vmatprep.subr.bf16.mxu0 0
          %1628 = vmatpush1.bf16.msra.mxu0 0
          %1629 = vmatprep.subr.bf16.mxu0 0
          %1630 = vmatpush1.bf16.msra.mxu0 0
          %1631 = vmatprep.subr.bf16.mxu0 0
          %1632 = vmatpush1.bf16.msra.mxu0 0
          %1633 = vmatprep.subr.bf16.mxu0 0
          %1634 = vmatpush1.bf16.msra.mxu0 0
          %1635 = vmatprep.subr.bf16.mxu0 0
          %1636 = vmatpush1.bf16.msra.mxu0 0
          %1637 = vmatprep.subr.bf16.mxu0 0
          %1638 = vmatpush1.bf16.msra.mxu0 0
          %1639 = vmatprep.subr.bf16.mxu0 0
          %1640 = vmatpush1.bf16.msra.mxu0 0
          %1641 = vmatprep.subr.bf16.mxu0 0
          %1642 = vmatpush1.bf16.msra.mxu0 0
          %1643 = vmatprep.mubr.bf16.mxu0 0
          %1644 = vmatmul.mubr.bf16.gmra.mrb[0].mxu0 %v1609
          %v1645 = vpop.f32.mrb[0].mxu0
          %v1646 = vadd.f32 0.0, %v1645
          %v1647 = vpop.f32.mrb[0].mxu0
          %v1648 = vpop.f32.mrb[0].mxu0
          %v1649 = vpop.f32.mrb[0].mxu0
          %1650 = vdwg.mxu0
          %1651 = vst [vmem:[%s536] sm:$0x1] %v1646
        $region76: #{text_encoder_forward.1} parent=67 // pred_fallthru
          _
        %s1652 = sand.u32 %s348, 1
        %s1653 = scalar_lea.sflag [#allocation5], %s1652
        %s1654 = sand.u32 %s348, 1
        %s1655 = scalar_lea.vmem [#allocation4], %s1654
        // Predicated region
        $region77: #{text_encoder_forward.1} parent=67 // pred_check
          %p1656 = pneg %p358
        $region78: #{text_encoder_forward.1} parent=67 // pred_check_branch
          %1658 = sbr.rel (%p1656) target = $region80
        $region79: #{text_encoder_forward.1} parent=67 // pred_region
          %s1660 = ssub.s32 16, 16
          %1661 = vsyncadd %s1653, %s1660
          %s1662 = smul.addr %s30, 16
          %s1663 = scalar_lea.hbm %s12, %s1662
          %s1665 = sshll.u32 %s1655, 4
          %s1666 = int_to_ptr.vmem [resolvable:$true] %s1665
          %1668 = dma.vmem_to_hbm [thread:$0]  %s1666, 16, %s1663, %s1653
        $region80: #{text_encoder_forward.1} parent=67 // pred_fallthru
          _
      $region68: #{text_encoder_forward.1} parent=5 // pred_fallthru
        _
      %p1669 = scmp.le.s32.totalorder 2, %s21
      // Predicated region
      $region81: #{text_encoder_forward.1} parent=5 // pred_check
        %p1670 = pneg %p1669
      $region82: #{text_encoder_forward.1} parent=5 // pred_check_branch
        %1672 = sbr.rel (%p1670) target = $region84
      $region83: #{text_encoder_forward.1} parent=5 // pred_region
        %s1673 = ssub.s32 %s21, 2
        // Predicated region
        $region85: #{text_encoder_forward.1} parent=83 // pred_check
          %p1674 = pneg %p364
        $region86: #{text_encoder_forward.1} parent=83 // pred_check_branch
          %1676 = sbr.rel (%p1674) target = $region88
        $region87: #{text_encoder_forward.1} parent=83 // pred_region
          %s1677 = sand.u32 %s349, 1
          %s1678 = scalar_lea.sflag [#allocation5], %s1677
          %s1679 = sand.u32 %s349, 1
          %s1680 = scalar_lea.vmem [#allocation4], %s1679
          %1681 = dma.done %s1678, 16
        $region88: #{text_encoder_forward.1} parent=83 // pred_fallthru
          _
      $region84: #{text_encoder_forward.1} parent=5 // pred_fallthru
        _
    $region6: #{text_encoder_forward.1} parent=1 // loop_footer
      %s25 = sadd.s32 1, %s21
    $region7: #{text_encoder_forward.1} parent=1 // loop_footer_branch
      %20 = sbr.rel target = $region3
    $region8: #{text_encoder_forward.1} parent=1 // loop_exit
      _
    %1682 = vsyncpa [#allocation5], 1
    %s1683 = scalar_lea.sflag [#allocation5], 1
    %1684 = vsyncpa %s1683, 1

</llo_original>
